<compile_context>
chip_gen: v7x
topology: tpu7x:2x2x1
jax: 0.10.0
libtpu: 0.0.40
codegen_flags: <defaults>
</compile_context>

<pallas_src>
import jax
import jax.numpy as jnp
import numpy as np
from jax.experimental import pallas as pl
from jax.experimental.pallas import tpu as pltpu


def _round_up(x, m):
    return (x + m - 1) // m * m


def _bigru_dir_kernel(lo_ref, hi_ref, xproj_ref, whh_ref, bhhn_ref,
                      out_ref, hn_ref):
    """One GRU direction (grid axis = direction).

    lo_ref, hi_ref : (Bp, 1)  int32   valid iff lo <= i < hi
    xproj_ref      : (T, Bp, 3Hp)     x @ W_ih (+ folded biases), time order of
                                      this direction (backward is pre-reversed)
    whh_ref        : (Hp, 3Hp) bf16   fused hidden-to-hidden weights
    bhhn_ref       : (1, Hp)  f32     hidden bias of the n-gate (not foldable)
    out_ref        : (T, Bp, Hp) f32  per-step hidden (0 on padded positions)
    hn_ref         : (Bp, Hp)  f32    final hidden state
    """
    T, Bp, _ = xproj_ref.shape
    Hp = hn_ref.shape[-1]

    lo = lo_ref[...]                       # (Bp, 1) int32
    hi = hi_ref[...]
    whh = whh_ref[...]                     # (Hp, 3Hp) bf16, resident
    # Hoist the bias broadcast out of the loop (broadcasts are not CSE'd).
    bhhn = jnp.broadcast_to(bhhn_ref[...], (Bp, Hp)).astype(jnp.float32)

    def step(i, h):
        xp = xproj_ref[i].astype(jnp.float32)                 # (Bp, 3Hp)
        # Single fused MXU matmul for all three gates.
        hg = jnp.dot(h.astype(whh.dtype), whh,
                     preferred_element_type=jnp.float32)      # (Bp, 3Hp)
        r = jax.nn.sigmoid(xp[:, 0:Hp] + hg[:, 0:Hp])
        z = jax.nn.sigmoid(xp[:, Hp:2 * Hp] + hg[:, Hp:2 * Hp])
        n = jnp.tanh(xp[:, 2 * Hp:3 * Hp] + r * (hg[:, 2 * Hp:3 * Hp] + bhhn))
        h_new = (1.0 - z) * n + z * h
        valid = jnp.logical_and(i >= lo, i < hi)              # (Bp, 1) bool
        h_next = jnp.where(valid, h_new, h)                   # freeze past end
        out_ref[i] = jnp.where(valid, h_next, 0.0)            # padded -> 0
        return h_next

    h0 = jnp.zeros((Bp, Hp), jnp.float32)
    h_final = jax.lax.fori_loop(0, T, step, h0, unroll=(T <= 32))
    hn_ref[...] = h_final


def recurrent_context_forward(batch, batch_length, params):
    """Pallas equivalent of RecurrentContext.forward.

    batch        : (B, T_pad, input_size), batch_first like the PyTorch module
    batch_length : python ints / numpy array, sorted descending (pack_padded)
    returns (outputs_unpacked (B, T, 2H), hidden (2, B, H))
    """
    B, _, I = batch.shape
    H = params["wih_f"].shape[-1]
    lengths = np.asarray(batch_length, dtype=np.int32)
    T = int(lengths.max())                 # pad_packed_sequence output length

    Bp = _round_up(B, 8)                   # sublane-dense batch
    Hp = _round_up(H, 128)                 # lane-dense hidden

    # ---- time-major, padded input ----
    x = jnp.transpose(batch[:, :T, :].astype(jnp.float32), (1, 0, 2))  # (T,B,I)
    x = jnp.pad(x, ((0, 0), (0, Bp - B), (0, 0)))                      # (T,Bp,I)
    x2 = x.reshape(T * Bp, I).astype(jnp.bfloat16)

    # ---- fused / padded parameters (gate order r, z, n as in torch.nn.GRU) ----
    def fuse_wih(wih):                     # (3, I, H) -> (I, 3Hp)
        w = jnp.zeros((I, 3 * Hp), jnp.float32)
        for k in range(3):
            w = w.at[:, k * Hp:k * Hp + H].set(wih[k])
        return w

    def fuse_whh(whh):                     # (3, H, H) -> (Hp, 3Hp)
        w = jnp.zeros((Hp, 3 * Hp), jnp.float32)
        for k in range(3):
            w = w.at[:H, k * Hp:k * Hp + H].set(whh[k])
        return w

    def fold_bias(bih, bhh):               # bih + bhh for r,z; bih only for n
        b = jnp.zeros((1, 3 * Hp), jnp.float32)
        b = b.at[:, 0 * Hp:0 * Hp + H].set(bih[0] + bhh[0])
        b = b.at[:, 1 * Hp:1 * Hp + H].set(bih[1] + bhh[1])
        b = b.at[:, 2 * Hp:2 * Hp + H].set(bih[2])
        return b

    def pad_bhhn(bhh):                     # (3,1,H) -> (1, Hp)
        return jnp.pad(bhh[2], ((0, 0), (0, Hp - H)))

    # ---- input projections: one big GEMM per direction, biases folded ----
    def xproj(wih, bih, bhh):
        w = fuse_wih(wih).astype(jnp.bfloat16)
        p = jnp.dot(x2, w, preferred_element_type=jnp.float32)
        return p.reshape(T, Bp, 3 * Hp) + fold_bias(bih, bhh)          # f32

    xp_f = xproj(params["wih_f"], params["bih_f"], params["bhh_f"])
    xp_b = xproj(params["wih_b"], params["bih_b"], params["bhh_b"])[::-1]
    xp = jnp.stack([xp_f, xp_b], axis=0)               # (2, T, Bp, 3Hp) f32

    whh = jnp.stack([fuse_whh(params["whh_f"]),
                     fuse_whh(params["whh_b"])], axis=0).astype(jnp.bfloat16)
    bhhn = jnp.stack([pad_bhhn(params["bhh_f"]),
                      pad_bhhn(params["bhh_b"])], axis=0)               # (2,1,Hp)

    # ---- per-direction validity windows: valid iff lo <= i < hi ----
    len_p = np.zeros((Bp,), np.int32)
    len_p[:B] = lengths
    len_j = jnp.asarray(len_p).reshape(Bp, 1)
    lo = jnp.stack([jnp.zeros((Bp, 1), jnp.int32), T - len_j], axis=0)
    hi = jnp.stack([len_j, jnp.full((Bp, 1), T, jnp.int32)], axis=0)

    # NOTE: for production-size H / long T, chunk the time axis (extra grid dim
    # with "arbitrary" semantics) so resident blocks stay inside the v7x 64 MiB
    # VMEM budget; at these sizes everything fits comfortably.
    out, hn = pl.pallas_call(
        _bigru_dir_kernel,
        grid=(2,),
        in_specs=[
            pl.BlockSpec((None, Bp, 1), lambda d: (d, 0, 0)),            # lo
            pl.BlockSpec((None, Bp, 1), lambda d: (d, 0, 0)),            # hi
            pl.BlockSpec((None, T, Bp, 3 * Hp), lambda d: (d, 0, 0, 0)),  # xproj
            pl.BlockSpec((None, Hp, 3 * Hp), lambda d: (d, 0, 0)),        # whh
            pl.BlockSpec((None, 1, Hp), lambda d: (d, 0, 0)),             # bhh_n
        ],
        out_specs=[
            pl.BlockSpec((None, T, Bp, Hp), lambda d: (d, 0, 0, 0)),      # out
            pl.BlockSpec((None, Bp, Hp), lambda d: (d, 0, 0)),            # hn
        ],
        out_shape=[
            jax.ShapeDtypeStruct((2, T, Bp, Hp), jnp.float32),
            jax.ShapeDtypeStruct((2, Bp, Hp), jnp.float32),
        ],
        compiler_params=pltpu.CompilerParams(
            dimension_semantics=("parallel",)),      # 2 TCs on v7x: one per dir
    )(lo, hi, xp, whh, bhhn)

    out_f = out[0, :, :B, :H]                        # (T, B, H), forward time
    out_b = out[1, ::-1, :B, :H]                     # flip back to forward time
    outputs = jnp.concatenate([out_f, out_b], axis=-1)      # (T, B, 2H)
    outputs_unpacked = jnp.transpose(outputs, (1, 0, 2))    # (B, T, 2H)
    hidden = hn[:, :B, :H]                                  # (2, B, H)
    return outputs_unpacked, hidden


# ---------------- pure-numpy reference (for correctness check) ----------------
def _sigmoid(x):
    return 1.0 / (1.0 + np.exp(-x))


def _gru_cell_ref(x_t, h, wih, whh, bih, bhh):
    ig = lambda k: x_t @ wih[k] + bih[k]
    hg = lambda k: h @ whh[k] + bhh[k]
    r = _sigmoid(ig(0) + hg(0))
    z = _sigmoid(ig(1) + hg(1))
    n = np.tanh(ig(2) + r * hg(2))
    return (1.0 - z) * n + z * h


def reference_forward(batch, batch_length, params):
    p = {k: np.asarray(v, np.float64) for k, v in params.items()}
    lengths = np.asarray(batch_length)
    B, _, _ = batch.shape
    H = p["wih_f"].shape[-1]
    T = int(lengths.max())
    x = np.asarray(batch[:, :T, :], np.float64)
    outs = np.zeros((B, T, 2 * H))
    hn = np.zeros((2, B, H))
    for b in range(B):
        L = int(lengths[b])
        h = np.zeros((1, H))
        for t in range(L):
            h = _gru_cell_ref(x[b, t:t + 1], h, p["wih_f"], p["whh_f"], p["bih_f"], p["bhh_f"])
            outs[b, t, :H] = h[0]
        hn[0, b] = h[0]
        h = np.zeros((1, H))
        for t in range(L - 1, -1, -1):
            h = _gru_cell_ref(x[b, t:t + 1], h, p["wih_b"], p["whh_b"], p["bih_b"], p["bhh_b"])
            outs[b, t, H:] = h[0]
        hn[1, b] = h[0]
    return outs, hn


if __name__ == "__main__":
    B, T, I, H = 4, 8, 16, 32
    key = jax.random.PRNGKey(0)
    ks = jax.random.split(key, 9)
    s = 1.0 / np.sqrt(H)  # same scale as torch.nn.GRU default init
    params = {
        "wih_f": jax.random.uniform(ks[0], (3, I, H), jnp.float32, -s, s),
        "whh_f": jax.random.uniform(ks[1], (3, H, H), jnp.float32, -s, s),
        "bih_f": jax.random.uniform(ks[2], (3, 1, H), jnp.float32, -s, s),
        "bhh_f": jax.random.uniform(ks[3], (3, 1, H), jnp.float32, -s, s),
        "wih_b": jax.random.uniform(ks[4], (3, I, H), jnp.float32, -s, s),
        "whh_b": jax.random.uniform(ks[5], (3, H, H), jnp.float32, -s, s),
        "bih_b": jax.random.uniform(ks[6], (3, 1, H), jnp.float32, -s, s),
        "bhh_b": jax.random.uniform(ks[7], (3, 1, H), jnp.float32, -s, s),
    }
    batch = jax.random.normal(ks[8], (B, T, I), jnp.float32)
    batch_length = [8, 7, 5, 3]  # sorted descending, as pack_padded_sequence requires

    outputs, hidden = recurrent_context_forward(batch, batch_length, params)
    jax.block_until_ready((outputs, hidden))

    ref_out, ref_hid = reference_forward(np.asarray(batch), batch_length, params)
    # bf16 matmul operands (f32 accumulate/elementwise) -> 2e-2 tolerance.
    np.testing.assert_allclose(np.asarray(outputs), ref_out, atol=2e-2, rtol=2e-2)
    np.testing.assert_allclose(np.asarray(hidden), ref_hid, atol=2e-2, rtol=2e-2)
    print("KERNEL_OK")
</pallas_src>

<mosaic_0001>
module attributes {stable_mosaic.version = 11 : i64} {
  func.func @_bigru_dir_kernel(%arg0: i32, %arg1: memref<1x8x1xi32, #tpu.memory_space<vmem>>, %arg2: memref<1x8x1xi32, #tpu.memory_space<vmem>>, %arg3: memref<1x8x8x384xf32, #tpu.memory_space<vmem>>, %arg4: memref<1x128x384xbf16, #tpu.memory_space<vmem>>, %arg5: memref<1x1x128xf32, #tpu.memory_space<vmem>>, %arg6: memref<1x8x8x128xf32, #tpu.memory_space<vmem>>, %arg7: memref<1x8x128xf32, #tpu.memory_space<vmem>>) attributes {dimension_semantics = [#tpu.dimension_semantics<parallel>], iteration_bounds = array<i64: 2>, scalar_prefetch = 0 : i64, scratch_operands = 0 : i64, tpu.core_type = #tpu.core_type<tc>, window_params = [{transform_indices = @transform_0, window_bounds = array<i64: 1, 8, 1>}, {transform_indices = @transform_1, window_bounds = array<i64: 1, 8, 1>}, {transform_indices = @transform_2, window_bounds = array<i64: 1, 8, 8, 384>}, {transform_indices = @transform_3, window_bounds = array<i64: 1, 128, 384>}, {transform_indices = @transform_4, window_bounds = array<i64: 1, 1, 128>}, {transform_indices = @transform_5, window_bounds = array<i64: 1, 8, 8, 128>}, {transform_indices = @transform_6, window_bounds = array<i64: 1, 8, 128>}]} {
    %c0 = arith.constant 0 : index
    %c0_0 = arith.constant 0 : index
    %c0_1 = arith.constant 0 : index
    %0 = vector.load %arg1[%c0, %c0_0, %c0_1] : memref<1x8x1xi32, #tpu.memory_space<vmem>>, vector<1x8x1xi32>
    %1 = vector.shape_cast %0 : vector<1x8x1xi32> to vector<8x1xi32>
    %c0_2 = arith.constant 0 : index
    %c0_3 = arith.constant 0 : index
    %c0_4 = arith.constant 0 : index
    %2 = vector.load %arg2[%c0_2, %c0_3, %c0_4] : memref<1x8x1xi32, #tpu.memory_space<vmem>>, vector<1x8x1xi32>
    %3 = vector.shape_cast %2 : vector<1x8x1xi32> to vector<8x1xi32>
    %c0_5 = arith.constant 0 : index
    %c0_6 = arith.constant 0 : index
    %c0_7 = arith.constant 0 : index
    %4 = vector.load %arg4[%c0_5, %c0_6, %c0_7] : memref<1x128x384xbf16, #tpu.memory_space<vmem>>, vector<1x128x384xbf16>
    %5 = vector.shape_cast %4 : vector<1x128x384xbf16> to vector<128x384xbf16>
    %c0_8 = arith.constant 0 : index
    %c0_9 = arith.constant 0 : index
    %c0_10 = arith.constant 0 : index
    %6 = vector.load %arg5[%c0_8, %c0_9, %c0_10] : memref<1x1x128xf32, #tpu.memory_space<vmem>>, vector<1x1x128xf32>
    %7 = vector.shape_cast %6 : vector<1x1x128xf32> to vector<1x128xf32>
    %8 = vector.shape_cast %7 : vector<1x128xf32> to vector<1x128xf32>
    %9 = vector.broadcast %8 : vector<1x128xf32> to vector<8x128xf32>
    %cst = arith.constant 0.000000e+00 : f32
    %10 = vector.broadcast %cst : f32 to vector<8x128xf32>
    %c0_i32 = arith.constant 0 : i32
    %c0_11 = arith.constant 0 : index
    %11 = arith.index_cast %c0_i32 : i32 to index
    %c0_12 = arith.constant 0 : index
    %c0_13 = arith.constant 0 : index
    %12 = vector.load %arg3[%c0_11, %11, %c0_12, %c0_13] : memref<1x8x8x384xf32, #tpu.memory_space<vmem>>, vector<1x1x8x384xf32>
    %13 = vector.shape_cast %12 : vector<1x1x8x384xf32> to vector<8x384xf32>
    %14 = arith.truncf %10 : vector<8x128xf32> to vector<8x128xbf16>
    %cst_14 = arith.constant dense<0.000000e+00> : vector<8x384xf32>
    %15 = tpu.matmul %14, %5, %cst_14 {dimension_numbers = #tpu.dot_dimension_numbers<[1], [0], [0], [1], [0, 0, 1, 1], [], []>} : vector<8x128xbf16>, vector<128x384xbf16>, vector<8x384xf32> -> vector<8x384xf32>
    %16 = vector.extract_strided_slice %13 {offsets = [0, 0], sizes = [8, 128], strides = [1, 1]} : vector<8x384xf32> to vector<8x128xf32>
    %17 = vector.extract_strided_slice %15 {offsets = [0, 0], sizes = [8, 128], strides = [1, 1]} : vector<8x384xf32> to vector<8x128xf32>
    %18 = arith.addf %16, %17 : vector<8x128xf32>
    %19 = arith.negf %18 : vector<8x128xf32>
    %20 = math.exp %19 : vector<8x128xf32>
    %cst_15 = arith.constant 1.000000e+00 : f32
    %21 = vector.broadcast %cst_15 : f32 to vector<8x128xf32>
    %22 = arith.addf %21, %20 : vector<8x128xf32>
    %23 = arith.divf %21, %22 : vector<8x128xf32>
    %24 = vector.extract_strided_slice %13 {offsets = [0, 128], sizes = [8, 128], strides = [1, 1]} : vector<8x384xf32> to vector<8x128xf32>
    %25 = vector.extract_strided_slice %15 {offsets = [0, 128], sizes = [8, 128], strides = [1, 1]} : vector<8x384xf32> to vector<8x128xf32>
    %26 = arith.addf %24, %25 : vector<8x128xf32>
    %27 = arith.negf %26 : vector<8x128xf32>
    %28 = math.exp %27 : vector<8x128xf32>
    %cst_16 = arith.constant 1.000000e+00 : f32
    %29 = vector.broadcast %cst_16 : f32 to vector<8x128xf32>
    %30 = arith.addf %29, %28 : vector<8x128xf32>
    %31 = arith.divf %29, %30 : vector<8x128xf32>
    %32 = vector.extract_strided_slice %13 {offsets = [0, 256], sizes = [8, 128], strides = [1, 1]} : vector<8x384xf32> to vector<8x128xf32>
    %33 = vector.extract_strided_slice %15 {offsets = [0, 256], sizes = [8, 128], strides = [1, 1]} : vector<8x384xf32> to vector<8x128xf32>
    %34 = arith.addf %33, %9 : vector<8x128xf32>
    %35 = arith.mulf %23, %34 : vector<8x128xf32>
    %36 = arith.addf %32, %35 : vector<8x128xf32>
    %37 = math.tanh %36 : vector<8x128xf32>
    %cst_17 = arith.constant 1.000000e+00 : f32
    %38 = vector.broadcast %cst_17 : f32 to vector<8x128xf32>
    %39 = arith.subf %38, %31 : vector<8x128xf32>
    %40 = arith.mulf %39, %37 : vector<8x128xf32>
    %41 = arith.mulf %31, %10 : vector<8x128xf32>
    %42 = arith.addf %40, %41 : vector<8x128xf32>
    %43 = vector.broadcast %c0_i32 : i32 to vector<8x1xi32>
    %44 = arith.cmpi sge, %43, %1 : vector<8x1xi32>
    %45 = vector.broadcast %c0_i32 : i32 to vector<8x1xi32>
    %46 = arith.cmpi slt, %45, %3 : vector<8x1xi32>
    %47 = arith.andi %44, %46 : vector<8x1xi1>
    %48 = vector.shape_cast %47 : vector<8x1xi1> to vector<8x1xi1>
    %49 = vector.broadcast %48 : vector<8x1xi1> to vector<8x128xi1>
    %50 = arith.select %49, %42, %10 : vector<8x128xi1>, vector<8x128xf32>
    %cst_18 = arith.constant 0.000000e+00 : f32
    %51 = vector.shape_cast %47 : vector<8x1xi1> to vector<8x1xi1>
    %52 = vector.broadcast %51 : vector<8x1xi1> to vector<8x128xi1>
    %53 = vector.broadcast %cst_18 : f32 to vector<8x128xf32>
    %54 = arith.select %52, %50, %53 : vector<8x128xi1>, vector<8x128xf32>
    %c0_19 = arith.constant 0 : index
    %55 = arith.index_cast %c0_i32 : i32 to index
    %c0_20 = arith.constant 0 : index
    %c0_21 = arith.constant 0 : index
    %56 = vector.load %arg6[%c0_19, %55, %c0_20, %c0_21] : memref<1x8x8x128xf32, #tpu.memory_space<vmem>>, vector<1x1x8x128xf32>
    %57 = vector.shape_cast %56 : vector<1x1x8x128xf32> to vector<8x128xf32>
    %58 = vector.shape_cast %54 : vector<8x128xf32> to vector<1x1x8x128xf32>
    tpu.vector_store %arg6[%c0_19, %55, %c0_20, %c0_21], %58 {strides = array<i32>} : memref<1x8x8x128xf32, #tpu.memory_space<vmem>>, vector<1x1x8x128xf32>,
    %c1_i32 = arith.constant 1 : i32
    %c0_22 = arith.constant 0 : index
    %59 = arith.index_cast %c1_i32 : i32 to index
    %c0_23 = arith.constant 0 : index
    %c0_24 = arith.constant 0 : index
    %60 = vector.load %arg3[%c0_22, %59, %c0_23, %c0_24] : memref<1x8x8x384xf32, #tpu.memory_space<vmem>>, vector<1x1x8x384xf32>
    %61 = vector.shape_cast %60 : vector<1x1x8x384xf32> to vector<8x384xf32>
    %62 = arith.truncf %50 : vector<8x128xf32> to vector<8x128xbf16>
    %cst_25 = arith.constant dense<0.000000e+00> : vector<8x384xf32>
    %63 = tpu.matmul %62, %5, %cst_25 {dimension_numbers = #tpu.dot_dimension_numbers<[1], [0], [0], [1], [0, 0, 1, 1], [], []>} : vector<8x128xbf16>, vector<128x384xbf16>, vector<8x384xf32> -> vector<8x384xf32>
    %64 = vector.extract_strided_slice %61 {offsets = [0, 0], sizes = [8, 128], strides = [1, 1]} : vector<8x384xf32> to vector<8x128xf32>
    %65 = vector.extract_strided_slice %63 {offsets = [0, 0], sizes = [8, 128], strides = [1, 1]} : vector<8x384xf32> to vector<8x128xf32>
    %66 = arith.addf %64, %65 : vector<8x128xf32>
    %67 = arith.negf %66 : vector<8x128xf32>
    %68 = math.exp %67 : vector<8x128xf32>
    %cst_26 = arith.constant 1.000000e+00 : f32
    %69 = vector.broadcast %cst_26 : f32 to vector<8x128xf32>
    %70 = arith.addf %69, %68 : vector<8x128xf32>
    %71 = arith.divf %69, %70 : vector<8x128xf32>
    %72 = vector.extract_strided_slice %61 {offsets = [0, 128], sizes = [8, 128], strides = [1, 1]} : vector<8x384xf32> to vector<8x128xf32>
    %73 = vector.extract_strided_slice %63 {offsets = [0, 128], sizes = [8, 128], strides = [1, 1]} : vector<8x384xf32> to vector<8x128xf32>
    %74 = arith.addf %72, %73 : vector<8x128xf32>
    %75 = arith.negf %74 : vector<8x128xf32>
    %76 = math.exp %75 : vector<8x128xf32>
    %cst_27 = arith.constant 1.000000e+00 : f32
    %77 = vector.broadcast %cst_27 : f32 to vector<8x128xf32>
    %78 = arith.addf %77, %76 : vector<8x128xf32>
    %79 = arith.divf %77, %78 : vector<8x128xf32>
    %80 = vector.extract_strided_slice %61 {offsets = [0, 256], sizes = [8, 128], strides = [1, 1]} : vector<8x384xf32> to vector<8x128xf32>
    %81 = vector.extract_strided_slice %63 {offsets = [0, 256], sizes = [8, 128], strides = [1, 1]} : vector<8x384xf32> to vector<8x128xf32>
    %82 = arith.addf %81, %9 : vector<8x128xf32>
    %83 = arith.mulf %71, %82 : vector<8x128xf32>
    %84 = arith.addf %80, %83 : vector<8x128xf32>
    %85 = math.tanh %84 : vector<8x128xf32>
    %cst_28 = arith.constant 1.000000e+00 : f32
    %86 = vector.broadcast %cst_28 : f32 to vector<8x128xf32>
    %87 = arith.subf %86, %79 : vector<8x128xf32>
    %88 = arith.mulf %87, %85 : vector<8x128xf32>
    %89 = arith.mulf %79, %50 : vector<8x128xf32>
    %90 = arith.addf %88, %89 : vector<8x128xf32>
    %91 = vector.broadcast %c1_i32 : i32 to vector<8x1xi32>
    %92 = arith.cmpi sge, %91, %1 : vector<8x1xi32>
    %93 = vector.broadcast %c1_i32 : i32 to vector<8x1xi32>
    %94 = arith.cmpi slt, %93, %3 : vector<8x1xi32>
    %95 = arith.andi %92, %94 : vector<8x1xi1>
    %96 = vector.shape_cast %95 : vector<8x1xi1> to vector<8x1xi1>
    %97 = vector.broadcast %96 : vector<8x1xi1> to vector<8x128xi1>
    %98 = arith.select %97, %90, %50 : vector<8x128xi1>, vector<8x128xf32>
    %cst_29 = arith.constant 0.000000e+00 : f32
    %99 = vector.shape_cast %95 : vector<8x1xi1> to vector<8x1xi1>
    %100 = vector.broadcast %99 : vector<8x1xi1> to vector<8x128xi1>
    %101 = vector.broadcast %cst_29 : f32 to vector<8x128xf32>
    %102 = arith.select %100, %98, %101 : vector<8x128xi1>, vector<8x128xf32>
    %c0_30 = arith.constant 0 : index
    %103 = arith.index_cast %c1_i32 : i32 to index
    %c0_31 = arith.constant 0 : index
    %c0_32 = arith.constant 0 : index
    %104 = vector.load %arg6[%c0_30, %103, %c0_31, %c0_32] : memref<1x8x8x128xf32, #tpu.memory_space<vmem>>, vector<1x1x8x128xf32>
    %105 = vector.shape_cast %104 : vector<1x1x8x128xf32> to vector<8x128xf32>
    %106 = vector.shape_cast %102 : vector<8x128xf32> to vector<1x1x8x128xf32>
    tpu.vector_store %arg6[%c0_30, %103, %c0_31, %c0_32], %106 {strides = array<i32>} : memref<1x8x8x128xf32, #tpu.memory_space<vmem>>, vector<1x1x8x128xf32>,
    %c2_i32 = arith.constant 2 : i32
    %c0_33 = arith.constant 0 : index
    %107 = arith.index_cast %c2_i32 : i32 to index
    %c0_34 = arith.constant 0 : index
    %c0_35 = arith.constant 0 : index
    %108 = vector.load %arg3[%c0_33, %107, %c0_34, %c0_35] : memref<1x8x8x384xf32, #tpu.memory_space<vmem>>, vector<1x1x8x384xf32>
    %109 = vector.shape_cast %108 : vector<1x1x8x384xf32> to vector<8x384xf32>
    %110 = arith.truncf %98 : vector<8x128xf32> to vector<8x128xbf16>
    %cst_36 = arith.constant dense<0.000000e+00> : vector<8x384xf32>
    %111 = tpu.matmul %110, %5, %cst_36 {dimension_numbers = #tpu.dot_dimension_numbers<[1], [0], [0], [1], [0, 0, 1, 1], [], []>} : vector<8x128xbf16>, vector<128x384xbf16>, vector<8x384xf32> -> vector<8x384xf32>
    %112 = vector.extract_strided_slice %109 {offsets = [0, 0], sizes = [8, 128], strides = [1, 1]} : vector<8x384xf32> to vector<8x128xf32>
    %113 = vector.extract_strided_slice %111 {offsets = [0, 0], sizes = [8, 128], strides = [1, 1]} : vector<8x384xf32> to vector<8x128xf32>
    %114 = arith.addf %112, %113 : vector<8x128xf32>
    %115 = arith.negf %114 : vector<8x128xf32>
    %116 = math.exp %115 : vector<8x128xf32>
    %cst_37 = arith.constant 1.000000e+00 : f32
    %117 = vector.broadcast %cst_37 : f32 to vector<8x128xf32>
    %118 = arith.addf %117, %116 : vector<8x128xf32>
    %119 = arith.divf %117, %118 : vector<8x128xf32>
    %120 = vector.extract_strided_slice %109 {offsets = [0, 128], sizes = [8, 128], strides = [1, 1]} : vector<8x384xf32> to vector<8x128xf32>
    %121 = vector.extract_strided_slice %111 {offsets = [0, 128], sizes = [8, 128], strides = [1, 1]} : vector<8x384xf32> to vector<8x128xf32>
    %122 = arith.addf %120, %121 : vector<8x128xf32>
    %123 = arith.negf %122 : vector<8x128xf32>
    %124 = math.exp %123 : vector<8x128xf32>
    %cst_38 = arith.constant 1.000000e+00 : f32
    %125 = vector.broadcast %cst_38 : f32 to vector<8x128xf32>
    %126 = arith.addf %125, %124 : vector<8x128xf32>
    %127 = arith.divf %125, %126 : vector<8x128xf32>
    %128 = vector.extract_strided_slice %109 {offsets = [0, 256], sizes = [8, 128], strides = [1, 1]} : vector<8x384xf32> to vector<8x128xf32>
    %129 = vector.extract_strided_slice %111 {offsets = [0, 256], sizes = [8, 128], strides = [1, 1]} : vector<8x384xf32> to vector<8x128xf32>
    %130 = arith.addf %129, %9 : vector<8x128xf32>
    %131 = arith.mulf %119, %130 : vector<8x128xf32>
    %132 = arith.addf %128, %131 : vector<8x128xf32>
    %133 = math.tanh %132 : vector<8x128xf32>
    %cst_39 = arith.constant 1.000000e+00 : f32
    %134 = vector.broadcast %cst_39 : f32 to vector<8x128xf32>
    %135 = arith.subf %134, %127 : vector<8x128xf32>
    %136 = arith.mulf %135, %133 : vector<8x128xf32>
    %137 = arith.mulf %127, %98 : vector<8x128xf32>
    %138 = arith.addf %136, %137 : vector<8x128xf32>
    %139 = vector.broadcast %c2_i32 : i32 to vector<8x1xi32>
    %140 = arith.cmpi sge, %139, %1 : vector<8x1xi32>
    %141 = vector.broadcast %c2_i32 : i32 to vector<8x1xi32>
    %142 = arith.cmpi slt, %141, %3 : vector<8x1xi32>
    %143 = arith.andi %140, %142 : vector<8x1xi1>
    %144 = vector.shape_cast %143 : vector<8x1xi1> to vector<8x1xi1>
    %145 = vector.broadcast %144 : vector<8x1xi1> to vector<8x128xi1>
    %146 = arith.select %145, %138, %98 : vector<8x128xi1>, vector<8x128xf32>
    %cst_40 = arith.constant 0.000000e+00 : f32
    %147 = vector.shape_cast %143 : vector<8x1xi1> to vector<8x1xi1>
    %148 = vector.broadcast %147 : vector<8x1xi1> to vector<8x128xi1>
    %149 = vector.broadcast %cst_40 : f32 to vector<8x128xf32>
    %150 = arith.select %148, %146, %149 : vector<8x128xi1>, vector<8x128xf32>
    %c0_41 = arith.constant 0 : index
    %151 = arith.index_cast %c2_i32 : i32 to index
    %c0_42 = arith.constant 0 : index
    %c0_43 = arith.constant 0 : index
    %152 = vector.load %arg6[%c0_41, %151, %c0_42, %c0_43] : memref<1x8x8x128xf32, #tpu.memory_space<vmem>>, vector<1x1x8x128xf32>
    %153 = vector.shape_cast %152 : vector<1x1x8x128xf32> to vector<8x128xf32>
    %154 = vector.shape_cast %150 : vector<8x128xf32> to vector<1x1x8x128xf32>
    tpu.vector_store %arg6[%c0_41, %151, %c0_42, %c0_43], %154 {strides = array<i32>} : memref<1x8x8x128xf32, #tpu.memory_space<vmem>>, vector<1x1x8x128xf32>,
    %c3_i32 = arith.constant 3 : i32
    %c0_44 = arith.constant 0 : index
    %155 = arith.index_cast %c3_i32 : i32 to index
    %c0_45 = arith.constant 0 : index
    %c0_46 = arith.constant 0 : index
    %156 = vector.load %arg3[%c0_44, %155, %c0_45, %c0_46] : memref<1x8x8x384xf32, #tpu.memory_space<vmem>>, vector<1x1x8x384xf32>
    %157 = vector.shape_cast %156 : vector<1x1x8x384xf32> to vector<8x384xf32>
    %158 = arith.truncf %146 : vector<8x128xf32> to vector<8x128xbf16>
    %cst_47 = arith.constant dense<0.000000e+00> : vector<8x384xf32>
    %159 = tpu.matmul %158, %5, %cst_47 {dimension_numbers = #tpu.dot_dimension_numbers<[1], [0], [0], [1], [0, 0, 1, 1], [], []>} : vector<8x128xbf16>, vector<128x384xbf16>, vector<8x384xf32> -> vector<8x384xf32>
    %160 = vector.extract_strided_slice %157 {offsets = [0, 0], sizes = [8, 128], strides = [1, 1]} : vector<8x384xf32> to vector<8x128xf32>
    %161 = vector.extract_strided_slice %159 {offsets = [0, 0], sizes = [8, 128], strides = [1, 1]} : vector<8x384xf32> to vector<8x128xf32>
    %162 = arith.addf %160, %161 : vector<8x128xf32>
    %163 = arith.negf %162 : vector<8x128xf32>
    %164 = math.exp %163 : vector<8x128xf32>
    %cst_48 = arith.constant 1.000000e+00 : f32
    %165 = vector.broadcast %cst_48 : f32 to vector<8x128xf32>
    %166 = arith.addf %165, %164 : vector<8x128xf32>
    %167 = arith.divf %165, %166 : vector<8x128xf32>
    %168 = vector.extract_strided_slice %157 {offsets = [0, 128], sizes = [8, 128], strides = [1, 1]} : vector<8x384xf32> to vector<8x128xf32>
    %169 = vector.extract_strided_slice %159 {offsets = [0, 128], sizes = [8, 128], strides = [1, 1]} : vector<8x384xf32> to vector<8x128xf32>
    %170 = arith.addf %168, %169 : vector<8x128xf32>
    %171 = arith.negf %170 : vector<8x128xf32>
    %172 = math.exp %171 : vector<8x128xf32>
    %cst_49 = arith.constant 1.000000e+00 : f32
    %173 = vector.broadcast %cst_49 : f32 to vector<8x128xf32>
    %174 = arith.addf %173, %172 : vector<8x128xf32>
    %175 = arith.divf %173, %174 : vector<8x128xf32>
    %176 = vector.extract_strided_slice %157 {offsets = [0, 256], sizes = [8, 128], strides = [1, 1]} : vector<8x384xf32> to vector<8x128xf32>
    %177 = vector.extract_strided_slice %159 {offsets = [0, 256], sizes = [8, 128], strides = [1, 1]} : vector<8x384xf32> to vector<8x128xf32>
    %178 = arith.addf %177, %9 : vector<8x128xf32>
    %179 = arith.mulf %167, %178 : vector<8x128xf32>
    %180 = arith.addf %176, %179 : vector<8x128xf32>
    %181 = math.tanh %180 : vector<8x128xf32>
    %cst_50 = arith.constant 1.000000e+00 : f32
    %182 = vector.broadcast %cst_50 : f32 to vector<8x128xf32>
    %183 = arith.subf %182, %175 : vector<8x128xf32>
    %184 = arith.mulf %183, %181 : vector<8x128xf32>
    %185 = arith.mulf %175, %146 : vector<8x128xf32>
    %186 = arith.addf %184, %185 : vector<8x128xf32>
    %187 = vector.broadcast %c3_i32 : i32 to vector<8x1xi32>
    %188 = arith.cmpi sge, %187, %1 : vector<8x1xi32>
    %189 = vector.broadcast %c3_i32 : i32 to vector<8x1xi32>
    %190 = arith.cmpi slt, %189, %3 : vector<8x1xi32>
    %191 = arith.andi %188, %190 : vector<8x1xi1>
    %192 = vector.shape_cast %191 : vector<8x1xi1> to vector<8x1xi1>
    %193 = vector.broadcast %192 : vector<8x1xi1> to vector<8x128xi1>
    %194 = arith.select %193, %186, %146 : vector<8x128xi1>, vector<8x128xf32>
    %cst_51 = arith.constant 0.000000e+00 : f32
    %195 = vector.shape_cast %191 : vector<8x1xi1> to vector<8x1xi1>
    %196 = vector.broadcast %195 : vector<8x1xi1> to vector<8x128xi1>
    %197 = vector.broadcast %cst_51 : f32 to vector<8x128xf32>
    %198 = arith.select %196, %194, %197 : vector<8x128xi1>, vector<8x128xf32>
    %c0_52 = arith.constant 0 : index
    %199 = arith.index_cast %c3_i32 : i32 to index
    %c0_53 = arith.constant 0 : index
    %c0_54 = arith.constant 0 : index
    %200 = vector.load %arg6[%c0_52, %199, %c0_53, %c0_54] : memref<1x8x8x128xf32, #tpu.memory_space<vmem>>, vector<1x1x8x128xf32>
    %201 = vector.shape_cast %200 : vector<1x1x8x128xf32> to vector<8x128xf32>
    %202 = vector.shape_cast %198 : vector<8x128xf32> to vector<1x1x8x128xf32>
    tpu.vector_store %arg6[%c0_52, %199, %c0_53, %c0_54], %202 {strides = array<i32>} : memref<1x8x8x128xf32, #tpu.memory_space<vmem>>, vector<1x1x8x128xf32>,
    %c4_i32 = arith.constant 4 : i32
    %c0_55 = arith.constant 0 : index
    %203 = arith.index_cast %c4_i32 : i32 to index
    %c0_56 = arith.constant 0 : index
    %c0_57 = arith.constant 0 : index
    %204 = vector.load %arg3[%c0_55, %203, %c0_56, %c0_57] : memref<1x8x8x384xf32, #tpu.memory_space<vmem>>, vector<1x1x8x384xf32>
    %205 = vector.shape_cast %204 : vector<1x1x8x384xf32> to vector<8x384xf32>
    %206 = arith.truncf %194 : vector<8x128xf32> to vector<8x128xbf16>
    %cst_58 = arith.constant dense<0.000000e+00> : vector<8x384xf32>
    %207 = tpu.matmul %206, %5, %cst_58 {dimension_numbers = #tpu.dot_dimension_numbers<[1], [0], [0], [1], [0, 0, 1, 1], [], []>} : vector<8x128xbf16>, vector<128x384xbf16>, vector<8x384xf32> -> vector<8x384xf32>
    %208 = vector.extract_strided_slice %205 {offsets = [0, 0], sizes = [8, 128], strides = [1, 1]} : vector<8x384xf32> to vector<8x128xf32>
    %209 = vector.extract_strided_slice %207 {offsets = [0, 0], sizes = [8, 128], strides = [1, 1]} : vector<8x384xf32> to vector<8x128xf32>
    %210 = arith.addf %208, %209 : vector<8x128xf32>
    %211 = arith.negf %210 : vector<8x128xf32>
    %212 = math.exp %211 : vector<8x128xf32>
    %cst_59 = arith.constant 1.000000e+00 : f32
    %213 = vector.broadcast %cst_59 : f32 to vector<8x128xf32>
    %214 = arith.addf %213, %212 : vector<8x128xf32>
    %215 = arith.divf %213, %214 : vector<8x128xf32>
    %216 = vector.extract_strided_slice %205 {offsets = [0, 128], sizes = [8, 128], strides = [1, 1]} : vector<8x384xf32> to vector<8x128xf32>
    %217 = vector.extract_strided_slice %207 {offsets = [0, 128], sizes = [8, 128], strides = [1, 1]} : vector<8x384xf32> to vector<8x128xf32>
    %218 = arith.addf %216, %217 : vector<8x128xf32>
    %219 = arith.negf %218 : vector<8x128xf32>
    %220 = math.exp %219 : vector<8x128xf32>
    %cst_60 = arith.constant 1.000000e+00 : f32
    %221 = vector.broadcast %cst_60 : f32 to vector<8x128xf32>
    %222 = arith.addf %221, %220 : vector<8x128xf32>
    %223 = arith.divf %221, %222 : vector<8x128xf32>
    %224 = vector.extract_strided_slice %205 {offsets = [0, 256], sizes = [8, 128], strides = [1, 1]} : vector<8x384xf32> to vector<8x128xf32>
    %225 = vector.extract_strided_slice %207 {offsets = [0, 256], sizes = [8, 128], strides = [1, 1]} : vector<8x384xf32> to vector<8x128xf32>
    %226 = arith.addf %225, %9 : vector<8x128xf32>
    %227 = arith.mulf %215, %226 : vector<8x128xf32>
    %228 = arith.addf %224, %227 : vector<8x128xf32>
    %229 = math.tanh %228 : vector<8x128xf32>
    %cst_61 = arith.constant 1.000000e+00 : f32
    %230 = vector.broadcast %cst_61 : f32 to vector<8x128xf32>
    %231 = arith.subf %230, %223 : vector<8x128xf32>
    %232 = arith.mulf %231, %229 : vector<8x128xf32>
    %233 = arith.mulf %223, %194 : vector<8x128xf32>
    %234 = arith.addf %232, %233 : vector<8x128xf32>
    %235 = vector.broadcast %c4_i32 : i32 to vector<8x1xi32>
    %236 = arith.cmpi sge, %235, %1 : vector<8x1xi32>
    %237 = vector.broadcast %c4_i32 : i32 to vector<8x1xi32>
    %238 = arith.cmpi slt, %237, %3 : vector<8x1xi32>
    %239 = arith.andi %236, %238 : vector<8x1xi1>
    %240 = vector.shape_cast %239 : vector<8x1xi1> to vector<8x1xi1>
    %241 = vector.broadcast %240 : vector<8x1xi1> to vector<8x128xi1>
    %242 = arith.select %241, %234, %194 : vector<8x128xi1>, vector<8x128xf32>
    %cst_62 = arith.constant 0.000000e+00 : f32
    %243 = vector.shape_cast %239 : vector<8x1xi1> to vector<8x1xi1>
    %244 = vector.broadcast %243 : vector<8x1xi1> to vector<8x128xi1>
    %245 = vector.broadcast %cst_62 : f32 to vector<8x128xf32>
    %246 = arith.select %244, %242, %245 : vector<8x128xi1>, vector<8x128xf32>
    %c0_63 = arith.constant 0 : index
    %247 = arith.index_cast %c4_i32 : i32 to index
    %c0_64 = arith.constant 0 : index
    %c0_65 = arith.constant 0 : index
    %248 = vector.load %arg6[%c0_63, %247, %c0_64, %c0_65] : memref<1x8x8x128xf32, #tpu.memory_space<vmem>>, vector<1x1x8x128xf32>
    %249 = vector.shape_cast %248 : vector<1x1x8x128xf32> to vector<8x128xf32>
    %250 = vector.shape_cast %246 : vector<8x128xf32> to vector<1x1x8x128xf32>
    tpu.vector_store %arg6[%c0_63, %247, %c0_64, %c0_65], %250 {strides = array<i32>} : memref<1x8x8x128xf32, #tpu.memory_space<vmem>>, vector<1x1x8x128xf32>,
    %c5_i32 = arith.constant 5 : i32
    %c0_66 = arith.constant 0 : index
    %251 = arith.index_cast %c5_i32 : i32 to index
    %c0_67 = arith.constant 0 : index
    %c0_68 = arith.constant 0 : index
    %252 = vector.load %arg3[%c0_66, %251, %c0_67, %c0_68] : memref<1x8x8x384xf32, #tpu.memory_space<vmem>>, vector<1x1x8x384xf32>
    %253 = vector.shape_cast %252 : vector<1x1x8x384xf32> to vector<8x384xf32>
    %254 = arith.truncf %242 : vector<8x128xf32> to vector<8x128xbf16>
    %cst_69 = arith.constant dense<0.000000e+00> : vector<8x384xf32>
    %255 = tpu.matmul %254, %5, %cst_69 {dimension_numbers = #tpu.dot_dimension_numbers<[1], [0], [0], [1], [0, 0, 1, 1], [], []>} : vector<8x128xbf16>, vector<128x384xbf16>, vector<8x384xf32> -> vector<8x384xf32>
    %256 = vector.extract_strided_slice %253 {offsets = [0, 0], sizes = [8, 128], strides = [1, 1]} : vector<8x384xf32> to vector<8x128xf32>
    %257 = vector.extract_strided_slice %255 {offsets = [0, 0], sizes = [8, 128], strides = [1, 1]} : vector<8x384xf32> to vector<8x128xf32>
    %258 = arith.addf %256, %257 : vector<8x128xf32>
    %259 = arith.negf %258 : vector<8x128xf32>
    %260 = math.exp %259 : vector<8x128xf32>
    %cst_70 = arith.constant 1.000000e+00 : f32
    %261 = vector.broadcast %cst_70 : f32 to vector<8x128xf32>
    %262 = arith.addf %261, %260 : vector<8x128xf32>
    %263 = arith.divf %261, %262 : vector<8x128xf32>
    %264 = vector.extract_strided_slice %253 {offsets = [0, 128], sizes = [8, 128], strides = [1, 1]} : vector<8x384xf32> to vector<8x128xf32>
    %265 = vector.extract_strided_slice %255 {offsets = [0, 128], sizes = [8, 128], strides = [1, 1]} : vector<8x384xf32> to vector<8x128xf32>
    %266 = arith.addf %264, %265 : vector<8x128xf32>
    %267 = arith.negf %266 : vector<8x128xf32>
    %268 = math.exp %267 : vector<8x128xf32>
    %cst_71 = arith.constant 1.000000e+00 : f32
    %269 = vector.broadcast %cst_71 : f32 to vector<8x128xf32>
    %270 = arith.addf %269, %268 : vector<8x128xf32>
    %271 = arith.divf %269, %270 : vector<8x128xf32>
    %272 = vector.extract_strided_slice %253 {offsets = [0, 256], sizes = [8, 128], strides = [1, 1]} : vector<8x384xf32> to vector<8x128xf32>
    %273 = vector.extract_strided_slice %255 {offsets = [0, 256], sizes = [8, 128], strides = [1, 1]} : vector<8x384xf32> to vector<8x128xf32>
    %274 = arith.addf %273, %9 : vector<8x128xf32>
    %275 = arith.mulf %263, %274 : vector<8x128xf32>
    %276 = arith.addf %272, %275 : vector<8x128xf32>
    %277 = math.tanh %276 : vector<8x128xf32>
    %cst_72 = arith.constant 1.000000e+00 : f32
    %278 = vector.broadcast %cst_72 : f32 to vector<8x128xf32>
    %279 = arith.subf %278, %271 : vector<8x128xf32>
    %280 = arith.mulf %279, %277 : vector<8x128xf32>
    %281 = arith.mulf %271, %242 : vector<8x128xf32>
    %282 = arith.addf %280, %281 : vector<8x128xf32>
    %283 = vector.broadcast %c5_i32 : i32 to vector<8x1xi32>
    %284 = arith.cmpi sge, %283, %1 : vector<8x1xi32>
    %285 = vector.broadcast %c5_i32 : i32 to vector<8x1xi32>
    %286 = arith.cmpi slt, %285, %3 : vector<8x1xi32>
    %287 = arith.andi %284, %286 : vector<8x1xi1>
    %288 = vector.shape_cast %287 : vector<8x1xi1> to vector<8x1xi1>
    %289 = vector.broadcast %288 : vector<8x1xi1> to vector<8x128xi1>
    %290 = arith.select %289, %282, %242 : vector<8x128xi1>, vector<8x128xf32>
    %cst_73 = arith.constant 0.000000e+00 : f32
    %291 = vector.shape_cast %287 : vector<8x1xi1> to vector<8x1xi1>
    %292 = vector.broadcast %291 : vector<8x1xi1> to vector<8x128xi1>
    %293 = vector.broadcast %cst_73 : f32 to vector<8x128xf32>
    %294 = arith.select %292, %290, %293 : vector<8x128xi1>, vector<8x128xf32>
    %c0_74 = arith.constant 0 : index
    %295 = arith.index_cast %c5_i32 : i32 to index
    %c0_75 = arith.constant 0 : index
    %c0_76 = arith.constant 0 : index
    %296 = vector.load %arg6[%c0_74, %295, %c0_75, %c0_76] : memref<1x8x8x128xf32, #tpu.memory_space<vmem>>, vector<1x1x8x128xf32>
    %297 = vector.shape_cast %296 : vector<1x1x8x128xf32> to vector<8x128xf32>
    %298 = vector.shape_cast %294 : vector<8x128xf32> to vector<1x1x8x128xf32>
    tpu.vector_store %arg6[%c0_74, %295, %c0_75, %c0_76], %298 {strides = array<i32>} : memref<1x8x8x128xf32, #tpu.memory_space<vmem>>, vector<1x1x8x128xf32>,
    %c6_i32 = arith.constant 6 : i32
    %c0_77 = arith.constant 0 : index
    %299 = arith.index_cast %c6_i32 : i32 to index
    %c0_78 = arith.constant 0 : index
    %c0_79 = arith.constant 0 : index
    %300 = vector.load %arg3[%c0_77, %299, %c0_78, %c0_79] : memref<1x8x8x384xf32, #tpu.memory_space<vmem>>, vector<1x1x8x384xf32>
    %301 = vector.shape_cast %300 : vector<1x1x8x384xf32> to vector<8x384xf32>
    %302 = arith.truncf %290 : vector<8x128xf32> to vector<8x128xbf16>
    %cst_80 = arith.constant dense<0.000000e+00> : vector<8x384xf32>
    %303 = tpu.matmul %302, %5, %cst_80 {dimension_numbers = #tpu.dot_dimension_numbers<[1], [0], [0], [1], [0, 0, 1, 1], [], []>} : vector<8x128xbf16>, vector<128x384xbf16>, vector<8x384xf32> -> vector<8x384xf32>
    %304 = vector.extract_strided_slice %301 {offsets = [0, 0], sizes = [8, 128], strides = [1, 1]} : vector<8x384xf32> to vector<8x128xf32>
    %305 = vector.extract_strided_slice %303 {offsets = [0, 0], sizes = [8, 128], strides = [1, 1]} : vector<8x384xf32> to vector<8x128xf32>
    %306 = arith.addf %304, %305 : vector<8x128xf32>
    %307 = arith.negf %306 : vector<8x128xf32>
    %308 = math.exp %307 : vector<8x128xf32>
    %cst_81 = arith.constant 1.000000e+00 : f32
    %309 = vector.broadcast %cst_81 : f32 to vector<8x128xf32>
    %310 = arith.addf %309, %308 : vector<8x128xf32>
    %311 = arith.divf %309, %310 : vector<8x128xf32>
    %312 = vector.extract_strided_slice %301 {offsets = [0, 128], sizes = [8, 128], strides = [1, 1]} : vector<8x384xf32> to vector<8x128xf32>
    %313 = vector.extract_strided_slice %303 {offsets = [0, 128], sizes = [8, 128], strides = [1, 1]} : vector<8x384xf32> to vector<8x128xf32>
    %314 = arith.addf %312, %313 : vector<8x128xf32>
    %315 = arith.negf %314 : vector<8x128xf32>
    %316 = math.exp %315 : vector<8x128xf32>
    %cst_82 = arith.constant 1.000000e+00 : f32
    %317 = vector.broadcast %cst_82 : f32 to vector<8x128xf32>
    %318 = arith.addf %317, %316 : vector<8x128xf32>
    %319 = arith.divf %317, %318 : vector<8x128xf32>
    %320 = vector.extract_strided_slice %301 {offsets = [0, 256], sizes = [8, 128], strides = [1, 1]} : vector<8x384xf32> to vector<8x128xf32>
    %321 = vector.extract_strided_slice %303 {offsets = [0, 256], sizes = [8, 128], strides = [1, 1]} : vector<8x384xf32> to vector<8x128xf32>
    %322 = arith.addf %321, %9 : vector<8x128xf32>
    %323 = arith.mulf %311, %322 : vector<8x128xf32>
    %324 = arith.addf %320, %323 : vector<8x128xf32>
    %325 = math.tanh %324 : vector<8x128xf32>
    %cst_83 = arith.constant 1.000000e+00 : f32
    %326 = vector.broadcast %cst_83 : f32 to vector<8x128xf32>
    %327 = arith.subf %326, %319 : vector<8x128xf32>
    %328 = arith.mulf %327, %325 : vector<8x128xf32>
    %329 = arith.mulf %319, %290 : vector<8x128xf32>
    %330 = arith.addf %328, %329 : vector<8x128xf32>
    %331 = vector.broadcast %c6_i32 : i32 to vector<8x1xi32>
    %332 = arith.cmpi sge, %331, %1 : vector<8x1xi32>
    %333 = vector.broadcast %c6_i32 : i32 to vector<8x1xi32>
    %334 = arith.cmpi slt, %333, %3 : vector<8x1xi32>
    %335 = arith.andi %332, %334 : vector<8x1xi1>
    %336 = vector.shape_cast %335 : vector<8x1xi1> to vector<8x1xi1>
    %337 = vector.broadcast %336 : vector<8x1xi1> to vector<8x128xi1>
    %338 = arith.select %337, %330, %290 : vector<8x128xi1>, vector<8x128xf32>
    %cst_84 = arith.constant 0.000000e+00 : f32
    %339 = vector.shape_cast %335 : vector<8x1xi1> to vector<8x1xi1>
    %340 = vector.broadcast %339 : vector<8x1xi1> to vector<8x128xi1>
    %341 = vector.broadcast %cst_84 : f32 to vector<8x128xf32>
    %342 = arith.select %340, %338, %341 : vector<8x128xi1>, vector<8x128xf32>
    %c0_85 = arith.constant 0 : index
    %343 = arith.index_cast %c6_i32 : i32 to index
    %c0_86 = arith.constant 0 : index
    %c0_87 = arith.constant 0 : index
    %344 = vector.load %arg6[%c0_85, %343, %c0_86, %c0_87] : memref<1x8x8x128xf32, #tpu.memory_space<vmem>>, vector<1x1x8x128xf32>
    %345 = vector.shape_cast %344 : vector<1x1x8x128xf32> to vector<8x128xf32>
    %346 = vector.shape_cast %342 : vector<8x128xf32> to vector<1x1x8x128xf32>
    tpu.vector_store %arg6[%c0_85, %343, %c0_86, %c0_87], %346 {strides = array<i32>} : memref<1x8x8x128xf32, #tpu.memory_space<vmem>>, vector<1x1x8x128xf32>,
    %c7_i32 = arith.constant 7 : i32
    %c0_88 = arith.constant 0 : index
    %347 = arith.index_cast %c7_i32 : i32 to index
    %c0_89 = arith.constant 0 : index
    %c0_90 = arith.constant 0 : index
    %348 = vector.load %arg3[%c0_88, %347, %c0_89, %c0_90] : memref<1x8x8x384xf32, #tpu.memory_space<vmem>>, vector<1x1x8x384xf32>
    %349 = vector.shape_cast %348 : vector<1x1x8x384xf32> to vector<8x384xf32>
    %350 = arith.truncf %338 : vector<8x128xf32> to vector<8x128xbf16>
    %cst_91 = arith.constant dense<0.000000e+00> : vector<8x384xf32>
    %351 = tpu.matmul %350, %5, %cst_91 {dimension_numbers = #tpu.dot_dimension_numbers<[1], [0], [0], [1], [0, 0, 1, 1], [], []>} : vector<8x128xbf16>, vector<128x384xbf16>, vector<8x384xf32> -> vector<8x384xf32>
    %352 = vector.extract_strided_slice %349 {offsets = [0, 0], sizes = [8, 128], strides = [1, 1]} : vector<8x384xf32> to vector<8x128xf32>
    %353 = vector.extract_strided_slice %351 {offsets = [0, 0], sizes = [8, 128], strides = [1, 1]} : vector<8x384xf32> to vector<8x128xf32>
    %354 = arith.addf %352, %353 : vector<8x128xf32>
    %355 = arith.negf %354 : vector<8x128xf32>
    %356 = math.exp %355 : vector<8x128xf32>
    %cst_92 = arith.constant 1.000000e+00 : f32
    %357 = vector.broadcast %cst_92 : f32 to vector<8x128xf32>
    %358 = arith.addf %357, %356 : vector<8x128xf32>
    %359 = arith.divf %357, %358 : vector<8x128xf32>
    %360 = vector.extract_strided_slice %349 {offsets = [0, 128], sizes = [8, 128], strides = [1, 1]} : vector<8x384xf32> to vector<8x128xf32>
    %361 = vector.extract_strided_slice %351 {offsets = [0, 128], sizes = [8, 128], strides = [1, 1]} : vector<8x384xf32> to vector<8x128xf32>
    %362 = arith.addf %360, %361 : vector<8x128xf32>
    %363 = arith.negf %362 : vector<8x128xf32>
    %364 = math.exp %363 : vector<8x128xf32>
    %cst_93 = arith.constant 1.000000e+00 : f32
    %365 = vector.broadcast %cst_93 : f32 to vector<8x128xf32>
    %366 = arith.addf %365, %364 : vector<8x128xf32>
    %367 = arith.divf %365, %366 : vector<8x128xf32>
    %368 = vector.extract_strided_slice %349 {offsets = [0, 256], sizes = [8, 128], strides = [1, 1]} : vector<8x384xf32> to vector<8x128xf32>
    %369 = vector.extract_strided_slice %351 {offsets = [0, 256], sizes = [8, 128], strides = [1, 1]} : vector<8x384xf32> to vector<8x128xf32>
    %370 = arith.addf %369, %9 : vector<8x128xf32>
    %371 = arith.mulf %359, %370 : vector<8x128xf32>
    %372 = arith.addf %368, %371 : vector<8x128xf32>
    %373 = math.tanh %372 : vector<8x128xf32>
    %cst_94 = arith.constant 1.000000e+00 : f32
    %374 = vector.broadcast %cst_94 : f32 to vector<8x128xf32>
    %375 = arith.subf %374, %367 : vector<8x128xf32>
    %376 = arith.mulf %375, %373 : vector<8x128xf32>
    %377 = arith.mulf %367, %338 : vector<8x128xf32>
    %378 = arith.addf %376, %377 : vector<8x128xf32>
    %379 = vector.broadcast %c7_i32 : i32 to vector<8x1xi32>
    %380 = arith.cmpi sge, %379, %1 : vector<8x1xi32>
    %381 = vector.broadcast %c7_i32 : i32 to vector<8x1xi32>
    %382 = arith.cmpi slt, %381, %3 : vector<8x1xi32>
    %383 = arith.andi %380, %382 : vector<8x1xi1>
    %384 = vector.shape_cast %383 : vector<8x1xi1> to vector<8x1xi1>
    %385 = vector.broadcast %384 : vector<8x1xi1> to vector<8x128xi1>
    %386 = arith.select %385, %378, %338 : vector<8x128xi1>, vector<8x128xf32>
    %cst_95 = arith.constant 0.000000e+00 : f32
    %387 = vector.shape_cast %383 : vector<8x1xi1> to vector<8x1xi1>
    %388 = vector.broadcast %387 : vector<8x1xi1> to vector<8x128xi1>
    %389 = vector.broadcast %cst_95 : f32 to vector<8x128xf32>
    %390 = arith.select %388, %386, %389 : vector<8x128xi1>, vector<8x128xf32>
    %c0_96 = arith.constant 0 : index
    %391 = arith.index_cast %c7_i32 : i32 to index
    %c0_97 = arith.constant 0 : index
    %c0_98 = arith.constant 0 : index
    %392 = vector.load %arg6[%c0_96, %391, %c0_97, %c0_98] : memref<1x8x8x128xf32, #tpu.memory_space<vmem>>, vector<1x1x8x128xf32>
    %393 = vector.shape_cast %392 : vector<1x1x8x128xf32> to vector<8x128xf32>
    %394 = vector.shape_cast %390 : vector<8x128xf32> to vector<1x1x8x128xf32>
    tpu.vector_store %arg6[%c0_96, %391, %c0_97, %c0_98], %394 {strides = array<i32>} : memref<1x8x8x128xf32, #tpu.memory_space<vmem>>, vector<1x1x8x128xf32>,
    %c8_i32 = arith.constant 8 : i32
    %c0_99 = arith.constant 0 : index
    %c0_100 = arith.constant 0 : index
    %c0_101 = arith.constant 0 : index
    %395 = vector.load %arg7[%c0_99, %c0_100, %c0_101] : memref<1x8x128xf32, #tpu.memory_space<vmem>>, vector<1x8x128xf32>
    %396 = vector.shape_cast %395 : vector<1x8x128xf32> to vector<8x128xf32>
    %397 = vector.shape_cast %386 : vector<8x128xf32> to vector<1x8x128xf32>
    tpu.vector_store %arg7[%c0_99, %c0_100, %c0_101], %397 {strides = array<i32>} : memref<1x8x128xf32, #tpu.memory_space<vmem>>, vector<1x8x128xf32>,
    return
  }
  func.func @transform_0(%arg0: i32) -> (i32, i32, i32) {
    %c0_i32 = arith.constant 0 : i32
    %c0_i32_0 = arith.constant 0 : i32
    %c0_i32_1 = arith.constant 0 : i32
    return %arg0, %c0_i32, %c0_i32_0 : i32, i32, i32
  }
  func.func @transform_1(%arg0: i32) -> (i32, i32, i32) {
    %c0_i32 = arith.constant 0 : i32
    %c0_i32_0 = arith.constant 0 : i32
    %c0_i32_1 = arith.constant 0 : i32
    return %arg0, %c0_i32, %c0_i32_0 : i32, i32, i32
  }
  func.func @transform_2(%arg0: i32) -> (i32, i32, i32, i32) {
    %c0_i32 = arith.constant 0 : i32
    %c0_i32_0 = arith.constant 0 : i32
    %c0_i32_1 = arith.constant 0 : i32
    %c0_i32_2 = arith.constant 0 : i32
    return %arg0, %c0_i32, %c0_i32_0, %c0_i32_1 : i32, i32, i32, i32
  }
  func.func @transform_3(%arg0: i32) -> (i32, i32, i32) {
    %c0_i32 = arith.constant 0 : i32
    %c0_i32_0 = arith.constant 0 : i32
    %c0_i32_1 = arith.constant 0 : i32
    return %arg0, %c0_i32, %c0_i32_0 : i32, i32, i32
  }
  func.func @transform_4(%arg0: i32) -> (i32, i32, i32) {
    %c0_i32 = arith.constant 0 : i32
    %c0_i32_0 = arith.constant 0 : i32
    %c0_i32_1 = arith.constant 0 : i32
    return %arg0, %c0_i32, %c0_i32_0 : i32, i32, i32
  }
  func.func @transform_5(%arg0: i32) -> (i32, i32, i32, i32) {
    %c0_i32 = arith.constant 0 : i32
    %c0_i32_0 = arith.constant 0 : i32
    %c0_i32_1 = arith.constant 0 : i32
    %c0_i32_2 = arith.constant 0 : i32
    return %arg0, %c0_i32, %c0_i32_0, %c0_i32_1 : i32, i32, i32, i32
  }
  func.func @transform_6(%arg0: i32) -> (i32, i32, i32) {
    %c0_i32 = arith.constant 0 : i32
    %c0_i32_0 = arith.constant 0 : i32
    %c0_i32_1 = arith.constant 0 : i32
    return %arg0, %c0_i32, %c0_i32_0 : i32, i32, i32
  }
}

</mosaic_0001>

<llo_original>
// kernel: tpu_custom_call.1
$region0: #{tpu_custom_call.1}
  #allocation0 [shape = 'u32[]', space=smem, size = 0x4, offset = 0x4, fixed_abs, tag = 'smem constant byte address 0x4 - core index']
  #allocation1 [shape = 'u32[144,128]{1,0:T(1,128)}', space=vmem, size = 0x12000, scoped, tag = 'internal scratch']
  %s0 = inlined_call_operand.vmem [shape: s32[2,8,1], index: 0, kind: input, shape index: {}]
  %s1 = inlined_call_operand.vmem [shape: s32[2,8,1], index: 1, kind: input, shape index: {}]
  %s2 = inlined_call_operand.hbm [shape: f32[2,8,8,384], index: 2, kind: input, shape index: {}]
  %s3 = inlined_call_operand.hbm [shape: bf16[2,128,384], index: 3, kind: input, shape index: {}]
  %s4 = inlined_call_operand.vmem [shape: f32[2,1,128], index: 4, kind: input, shape index: {}]
  %s5 = inlined_call_operand.hbm [shape: f32[2,8,8,128], index: 5, kind: output, shape index: {0}]
  %s6 = inlined_call_operand.hbm [shape: f32[2,8,128], index: 6, kind: output, shape index: {1}]
  %7 = xla_tuple %s5, %s6
  %s8 = sld [smem:[#allocation0]]
  $region69: #{tpu_custom_call.1} parent=0
    _
  %s10 = ssub.s32 1, %s8
  %s11 = scalar_select 0, %s10, %s8
  $region1: #{tpu_custom_call.1} parent=0
    #allocation2 [shape = 'u8[196608]{0}', space=vmem, size = 0x30000, scoped, tag = 'input window, operand 2']
    #allocation3 [shape = 's32[2]{0}', space=sflag, size = 0x8, scoped, tag = 'scoped memory for tpu_custom_call.1']
    #allocation4 [shape = 's32[2]{0}', space=sflag, size = 0x8, scoped, tag = 'scoped memory for tpu_custom_call.1']
    #allocation5 [shape = 'u8[196608]{0}', space=vmem, size = 0x30000, scoped, tag = 'input window, operand 3']
    #allocation6 [shape = 's32[2]{0}', space=sflag, size = 0x8, scoped, tag = 'scoped memory for tpu_custom_call.1']
    #allocation7 [shape = 'u8[65536]{0}', space=vmem, size = 0x10000, scoped, tag = 'output window, operand 0']
    #allocation8 [shape = 'u8[8192]{0}', space=vmem, size = 0x2000, scoped, tag = 'output window, operand 1']
    #allocation9 [shape = 's32[2]{0}', space=sflag, size = 0x8, scoped, tag = 'scoped memory for tpu_custom_call.1']
    %12 = vsyncpa [#allocation3], 0
    %s13 = scalar_lea.sflag [#allocation3], 1
    %14 = vsyncpa %s13, 0
    %15 = vsyncpa [#allocation6], 0
    %s16 = scalar_lea.sflag [#allocation6], 1
    %17 = vsyncpa %s16, 0
    %18 = vsyncpa [#allocation4], 0
    %s19 = scalar_lea.sflag [#allocation4], 1
    %20 = vsyncpa %s19, 0
    %21 = vsyncpa [#allocation9], 0
    %s22 = scalar_lea.sflag [#allocation9], 1
    %23 = vsyncpa %s22, 0
    loop: start=0, step=1, limit=4
    $region2: #{tpu_custom_call.1} parent=1 // loop_pre_header
      _
    $region3: #{tpu_custom_call.1} parent=1 // loop_header
      %s25 = sphi 0, %s29
      %p26 = scmp.ge.s32.totalorder %s25, 4
      %s35 = sphi 0, %s37
      %s38 = sphi 0, %s35
      %s39 = sphi 0, %s38
      %s55 = sphi 0, %s39
      %s61 = sphi 0, %s63
      %s64 = sphi 0, %s61
      %s65 = sphi 0, %s64
      %s81 = sphi 0, %s65
      %s87 = sphi 0, %s89
      %s90 = sphi 0, %s87
      %s91 = sphi 0, %s90
      %s107 = sphi 0, %s91
      %s113 = sphi 0, %s115
      %s116 = sphi 0, %s113
      %s117 = sphi 0, %s116
      %s133 = sphi 0, %s117
      %s139 = sphi 0, %s141
      %s142 = sphi 0, %s139
      %s143 = sphi 0, %s142
      %s159 = sphi 0, %s143
      %s165 = sphi 0, %s167
      %s168 = sphi 0, %s165
      %s169 = sphi 0, %s168
      %s185 = sphi 0, %s169
      %s191 = sphi 0, %s193
      %s194 = sphi 0, %s191
      %s195 = sphi 0, %s194
      %s211 = sphi 0, %s195
    $region4: #{tpu_custom_call.1} parent=1 // loop_header_branch
      %28 = sbr.rel (%p26) target = $region8
    $region5: #{tpu_custom_call.1} parent=1 // loop_body
      %s30 = ssub.s32 %s25, 1
      %s31 = ssub.s32 %s25, 2
      %s32 = sadd.s32 %s25, 1
      %s33 = ssub.s32 %s25, %s32
      %p34 = scmp.eq.s32.totalorder %s33, 0
      %s36 = sadd.s32 %s35, 1
      %s37 = scalar_select %p34, %s35, %s36
      %p40 = pneg %p34
      %p41 = scmp.eq.s32.totalorder %s25, 1
      %p42 = por %p40, %p41
      %p43 = scmp.ne.s32.totalorder %s35, %s38
      %p44 = scmp.eq.s32.totalorder %s25, 0
      %p45 = por %p43, %p44
      %p46 = scmp.ne.s32.totalorder %s35, %s38
      %p47 = scmp.eq.s32.totalorder %s30, 1
      %p48 = por %p46, %p47
      %p49 = scmp.ne.s32.totalorder %s38, %s39
      %p50 = scmp.eq.s32.totalorder %s30, 0
      %p51 = por %p49, %p50
      %p52 = scmp.ne.s32.totalorder %s38, %s39
      %p53 = scmp.eq.s32.totalorder %s31, 1
      %p54 = por %p52, %p53
      %p56 = scmp.ne.s32.totalorder %s39, %s55
      %p57 = scmp.eq.s32.totalorder %s31, 0
      %p58 = por %p56, %p57
      %s59 = ssub.s32 %s25, %s32
      %p60 = scmp.eq.s32.totalorder %s59, 0
      %s62 = sadd.s32 %s61, 1
      %s63 = scalar_select %p60, %s61, %s62
      %p66 = pneg %p60
      %p67 = scmp.eq.s32.totalorder %s25, 1
      %p68 = por %p66, %p67
      %p69 = scmp.ne.s32.totalorder %s61, %s64
      %p70 = scmp.eq.s32.totalorder %s25, 0
      %p71 = por %p69, %p70
      %p72 = scmp.ne.s32.totalorder %s61, %s64
      %p73 = scmp.eq.s32.totalorder %s30, 1
      %p74 = por %p72, %p73
      %p75 = scmp.ne.s32.totalorder %s64, %s65
      %p76 = scmp.eq.s32.totalorder %s30, 0
      %p77 = por %p75, %p76
      %p78 = scmp.ne.s32.totalorder %s64, %s65
      %p79 = scmp.eq.s32.totalorder %s31, 1
      %p80 = por %p78, %p79
      %p82 = scmp.ne.s32.totalorder %s65, %s81
      %p83 = scmp.eq.s32.totalorder %s31, 0
      %p84 = por %p82, %p83
      %s85 = ssub.s32 %s25, %s32
      %p86 = scmp.eq.s32.totalorder %s85, 0
      %s88 = sadd.s32 %s87, 1
      %s89 = scalar_select %p86, %s87, %s88
      %p92 = pneg %p86
      %p93 = scmp.eq.s32.totalorder %s25, 1
      %p94 = por %p92, %p93
      %p95 = scmp.ne.s32.totalorder %s87, %s90
      %p96 = scmp.eq.s32.totalorder %s25, 0
      %p97 = por %p95, %p96
      %p98 = scmp.ne.s32.totalorder %s87, %s90
      %p99 = scmp.eq.s32.totalorder %s30, 1
      %p100 = por %p98, %p99
      %p101 = scmp.ne.s32.totalorder %s90, %s91
      %p102 = scmp.eq.s32.totalorder %s30, 0
      %p103 = por %p101, %p102
      %p104 = scmp.ne.s32.totalorder %s90, %s91
      %p105 = scmp.eq.s32.totalorder %s31, 1
      %p106 = por %p104, %p105
      %p108 = scmp.ne.s32.totalorder %s91, %s107
      %p109 = scmp.eq.s32.totalorder %s31, 0
      %p110 = por %p108, %p109
      %s111 = ssub.s32 %s25, %s32
      %p112 = scmp.eq.s32.totalorder %s111, 0
      %s114 = sadd.s32 %s113, 1
      %s115 = scalar_select %p112, %s113, %s114
      %p118 = pneg %p112
      %p119 = scmp.eq.s32.totalorder %s25, 1
      %p120 = por %p118, %p119
      %p121 = scmp.ne.s32.totalorder %s113, %s116
      %p122 = scmp.eq.s32.totalorder %s25, 0
      %p123 = por %p121, %p122
      %p124 = scmp.ne.s32.totalorder %s113, %s116
      %p125 = scmp.eq.s32.totalorder %s30, 1
      %p126 = por %p124, %p125
      %p127 = scmp.ne.s32.totalorder %s116, %s117
      %p128 = scmp.eq.s32.totalorder %s30, 0
      %p129 = por %p127, %p128
      %p130 = scmp.ne.s32.totalorder %s116, %s117
      %p131 = scmp.eq.s32.totalorder %s31, 1
      %p132 = por %p130, %p131
      %p134 = scmp.ne.s32.totalorder %s117, %s133
      %p135 = scmp.eq.s32.totalorder %s31, 0
      %p136 = por %p134, %p135
      %s137 = ssub.s32 %s25, %s32
      %p138 = scmp.eq.s32.totalorder %s137, 0
      %s140 = sadd.s32 %s139, 1
      %s141 = scalar_select %p138, %s139, %s140
      %p144 = pneg %p138
      %p145 = scmp.eq.s32.totalorder %s25, 1
      %p146 = por %p144, %p145
      %p147 = scmp.ne.s32.totalorder %s139, %s142
      %p148 = scmp.eq.s32.totalorder %s25, 0
      %p149 = por %p147, %p148
      %p150 = scmp.ne.s32.totalorder %s139, %s142
      %p151 = scmp.eq.s32.totalorder %s30, 1
      %p152 = por %p150, %p151
      %p153 = scmp.ne.s32.totalorder %s142, %s143
      %p154 = scmp.eq.s32.totalorder %s30, 0
      %p155 = por %p153, %p154
      %p156 = scmp.ne.s32.totalorder %s142, %s143
      %p157 = scmp.eq.s32.totalorder %s31, 1
      %p158 = por %p156, %p157
      %p160 = scmp.ne.s32.totalorder %s143, %s159
      %p161 = scmp.eq.s32.totalorder %s31, 0
      %p162 = por %p160, %p161
      %s163 = ssub.s32 %s25, %s32
      %p164 = scmp.eq.s32.totalorder %s163, 0
      %s166 = sadd.s32 %s165, 1
      %s167 = scalar_select %p164, %s165, %s166
      %p170 = pneg %p164
      %p171 = scmp.eq.s32.totalorder %s25, 1
      %p172 = por %p170, %p171
      %p173 = scmp.ne.s32.totalorder %s165, %s168
      %p174 = scmp.eq.s32.totalorder %s25, 0
      %p175 = por %p173, %p174
      %p176 = scmp.ne.s32.totalorder %s165, %s168
      %p177 = scmp.eq.s32.totalorder %s30, 1
      %p178 = por %p176, %p177
      %p179 = scmp.ne.s32.totalorder %s168, %s169
      %p180 = scmp.eq.s32.totalorder %s30, 0
      %p181 = por %p179, %p180
      %p182 = scmp.ne.s32.totalorder %s168, %s169
      %p183 = scmp.eq.s32.totalorder %s31, 1
      %p184 = por %p182, %p183
      %p186 = scmp.ne.s32.totalorder %s169, %s185
      %p187 = scmp.eq.s32.totalorder %s31, 0
      %p188 = por %p186, %p187
      %s189 = ssub.s32 %s25, %s32
      %p190 = scmp.eq.s32.totalorder %s189, 0
      %s192 = sadd.s32 %s191, 1
      %s193 = scalar_select %p190, %s191, %s192
      %p196 = pneg %p190
      %p197 = scmp.eq.s32.totalorder %s25, 1
      %p198 = por %p196, %p197
      %p199 = scmp.ne.s32.totalorder %s191, %s194
      %p200 = scmp.eq.s32.totalorder %s25, 0
      %p201 = por %p199, %p200
      %p202 = scmp.ne.s32.totalorder %s191, %s194
      %p203 = scmp.eq.s32.totalorder %s30, 1
      %p204 = por %p202, %p203
      %p205 = scmp.ne.s32.totalorder %s194, %s195
      %p206 = scmp.eq.s32.totalorder %s30, 0
      %p207 = por %p205, %p206
      %p208 = scmp.ne.s32.totalorder %s194, %s195
      %p209 = scmp.eq.s32.totalorder %s31, 1
      %p210 = por %p208, %p209
      %p212 = scmp.ne.s32.totalorder %s195, %s211
      %p213 = scmp.eq.s32.totalorder %s31, 0
      %p214 = por %p212, %p213
      %p215 = scmp.le.s32.totalorder 1, %s25
      %p216 = scmp.lt.s32.totalorder %s25, 3
      %p217 = pnand %p215, %p216
      %p218 = pneg %p217
      // Predicated region
      $region9: #{tpu_custom_call.1} parent=5 // pred_check
        _
      $region10: #{tpu_custom_call.1} parent=5 // pred_check_branch
        %220 = sbr.rel (%p217) target = $region12
      $region11: #{tpu_custom_call.1} parent=5 // pred_region
        %s221 = ssub.s32 %s25, 1
      $region12: #{tpu_custom_call.1} parent=5 // pred_fallthru
        _
      %p222 = scmp.lt.s32.totalorder %s25, 2
      // Predicated region
      $region13: #{tpu_custom_call.1} parent=5 // pred_check
        %p223 = pneg %p222
      $region14: #{tpu_custom_call.1} parent=5 // pred_check_branch
        %225 = sbr.rel (%p223) target = $region16
      $region15: #{tpu_custom_call.1} parent=5 // pred_region
        // Predicated region
        $region17: #{tpu_custom_call.1} parent=15 // pred_check
          %p226 = pneg %p45
        $region18: #{tpu_custom_call.1} parent=15 // pred_check_branch
          %228 = sbr.rel (%p226) target = $region20
        $region19: #{tpu_custom_call.1} parent=15 // pred_region
          %p229 = scmp.lt.s32.totalorder %s25, 1
          %s230 = scalar_select %p229, %s25, 1
          %s231 = smul.addr %s230, 8
          %s232 = scalar_lea.vmem %s0, %s231
        $region20: #{tpu_custom_call.1} parent=15 // pred_fallthru
          _
        // Predicated region
        $region21: #{tpu_custom_call.1} parent=15 // pred_check
          %p233 = pneg %p71
        $region22: #{tpu_custom_call.1} parent=15 // pred_check_branch
          %235 = sbr.rel (%p233) target = $region24
        $region23: #{tpu_custom_call.1} parent=15 // pred_region
          %p236 = scmp.lt.s32.totalorder %s25, 1
          %s237 = scalar_select %p236, %s25, 1
          %s238 = smul.addr %s237, 8
          %s239 = scalar_lea.vmem %s1, %s238
        $region24: #{tpu_custom_call.1} parent=15 // pred_fallthru
          _
        // Predicated region
        $region25: #{tpu_custom_call.1} parent=15 // pred_check
          %p240 = pneg %p97
        $region26: #{tpu_custom_call.1} parent=15 // pred_check_branch
          %242 = sbr.rel (%p240) target = $region28
        $region27: #{tpu_custom_call.1} parent=15 // pred_region
          %s243 = sand.u32 %s87, 1
          %s244 = scalar_lea.sflag [#allocation3], %s243
          %s245 = sand.u32 %s87, 1
          %s246 = smul.addr %s245, 192
          %s247 = scalar_lea.vmem [#allocation2], %s246
          %s249 = ssub.s32 3072, 3072
          %250 = vsyncadd %s244, %s249
          %s251 = smul.addr %s25, 24
          %s252 = smul.addr %s251, 128
          %s253 = scalar_lea.hbm %s2, %s252
          %s254 = sshll.u32 %s247, 4
          %s255 = int_to_ptr.vmem [resolvable:$true] %s254
          %260 = dma.hbm_to_vmem [thread:$0]  %s253, 3072, %s255, %s244, 384, 384, 24
        $region28: #{tpu_custom_call.1} parent=15 // pred_fallthru
          _
        // Predicated region
        $region29: #{tpu_custom_call.1} parent=15 // pred_check
          %p261 = pneg %p123
        $region30: #{tpu_custom_call.1} parent=15 // pred_check_branch
          %263 = sbr.rel (%p261) target = $region32
        $region31: #{tpu_custom_call.1} parent=15 // pred_region
          %s264 = sand.u32 %s113, 1
          %s265 = scalar_lea.sflag [#allocation6], %s264
          %s266 = sand.u32 %s113, 1
          %s267 = smul.addr %s266, 192
          %s268 = scalar_lea.vmem [#allocation5], %s267
          %s270 = ssub.s32 3072, 3072
          %271 = vsyncadd %s265, %s270
          %s272 = smul.addr %s25, 48
          %s273 = smul.addr %s272, 64
          %s274 = scalar_lea.hbm %s3, %s273
          %s275 = sshll.u32 %s268, 4
          %s276 = int_to_ptr.vmem [resolvable:$true] %s275
          %281 = dma.hbm_to_vmem [thread:$0]  %s274, 3072, %s276, %s265, 192, 192, 12
        $region32: #{tpu_custom_call.1} parent=15 // pred_fallthru
          _
        // Predicated region
        $region33: #{tpu_custom_call.1} parent=15 // pred_check
          %p282 = pneg %p149
        $region34: #{tpu_custom_call.1} parent=15 // pred_check_branch
          %284 = sbr.rel (%p282) target = $region36
        $region35: #{tpu_custom_call.1} parent=15 // pred_region
          %p285 = scmp.lt.s32.totalorder %s25, 1
          %s286 = scalar_select %p285, %s25, 1
          %s287 = scalar_lea.vmem %s4, %s286
        $region36: #{tpu_custom_call.1} parent=15 // pred_fallthru
          _
      $region16: #{tpu_custom_call.1} parent=5 // pred_fallthru
        _
      %p288 = scmp.le.s32.totalorder 1, %s25
      %p289 = scmp.lt.s32.totalorder %s25, 3
      %p290 = pnand %p288, %p289
      %p291 = pneg %p290
      // Predicated region
      $region37: #{tpu_custom_call.1} parent=5 // pred_check
        _
      $region38: #{tpu_custom_call.1} parent=5 // pred_check_branch
        %293 = sbr.rel (%p290) target = $region40
      $region39: #{tpu_custom_call.1} parent=5 // pred_region
        %s294 = ssub.s32 %s25, 1
        %s295 = sand.u32 %s90, 1
        %s296 = scalar_lea.sflag [#allocation3], %s295
        %s297 = sand.u32 %s90, 1
        %s298 = smul.addr %s297, 192
        %s299 = scalar_lea.vmem [#allocation2], %s298
        // Predicated region
        $region41: #{tpu_custom_call.1} parent=39 // pred_check
          %p300 = pneg %p103
        $region42: #{tpu_custom_call.1} parent=39 // pred_check_branch
          %302 = sbr.rel (%p300) target = $region44
        $region43: #{tpu_custom_call.1} parent=39 // pred_region
          %303 = dma.done %s296, 3072
        $region44: #{tpu_custom_call.1} parent=39 // pred_fallthru
          _
        %s304 = sand.u32 %s116, 1
        %s305 = scalar_lea.sflag [#allocation6], %s304
        %s306 = sand.u32 %s116, 1
        %s307 = smul.addr %s306, 192
        %s308 = scalar_lea.vmem [#allocation5], %s307
        // Predicated region
        $region45: #{tpu_custom_call.1} parent=39 // pred_check
          %p309 = pneg %p129
        $region46: #{tpu_custom_call.1} parent=39 // pred_check_branch
          %311 = sbr.rel (%p309) target = $region48
        $region47: #{tpu_custom_call.1} parent=39 // pred_region
          %312 = dma.done %s305, 3072
        $region48: #{tpu_custom_call.1} parent=39 // pred_fallthru
          _
        %p313 = scmp.lt.s32.totalorder %s30, 1
        %s314 = scalar_select %p313, %s30, 1
        %s315 = smul.addr %s314, 8
        %s316 = scalar_lea.vmem %s0, %s315
        %p317 = pneg %p51
        %p318 = pneg %p48
        %p319 = scmp.lt.s32.totalorder %s30, 1
        %s320 = scalar_select %p319, %s30, 1
        %s321 = smul.addr %s320, 8
        %s322 = scalar_lea.vmem %s1, %s321
        %p323 = pneg %p77
        %p324 = pneg %p74
        %s325 = sand.u32 %s90, 1
        %s326 = scalar_lea.sflag [#allocation3], %s325
        %s327 = sand.u32 %s90, 1
        %s328 = smul.addr %s327, 192
        %s329 = scalar_lea.vmem [#allocation2], %s328
        %p330 = pneg %p103
        %p331 = pneg %p100
        %s332 = sand.u32 %s116, 1
        %s333 = scalar_lea.sflag [#allocation6], %s332
        %s334 = sand.u32 %s116, 1
        %s335 = smul.addr %s334, 192
        %s336 = scalar_lea.vmem [#allocation5], %s335
        %p337 = pneg %p129
        %p338 = pneg %p126
        %p339 = scmp.lt.s32.totalorder %s30, 1
        %s340 = scalar_select %p339, %s30, 1
        %s341 = scalar_lea.vmem %s4, %s340
        %p342 = pneg %p155
        %p343 = pneg %p152
        %p344 = pneg %p181
        %p345 = pneg %p178
        %s346 = sand.u32 %s168, 1
        %s347 = scalar_lea.sflag [#allocation4], %s346
        %s348 = sand.u32 %s168, 1
        %s349 = smul.addr %s348, 64
        %s350 = scalar_lea.vmem [#allocation7], %s349
        %p351 = pneg %p207
        %p352 = pneg %p204
        %s353 = sand.u32 %s194, 1
        %s354 = scalar_lea.sflag [#allocation9], %s353
        %s355 = sand.u32 %s194, 1
        %s356 = smul.addr %s355, 8
        %s357 = scalar_lea.vmem [#allocation8], %s356
        %p358 = scmp.lt.s32.totalorder %s30, 1
        %s359 = scalar_select %p358, %s30, 1
        %s360 = smul.addr %s359, 8
        %s361 = scalar_lea.vmem %s0, %s360
        %p362 = scmp.lt.s32.totalorder %s30, 1
        %s363 = scalar_select %p362, %s30, 1
        %s364 = smul.addr %s363, 8
        %s365 = scalar_lea.vmem %s1, %s364
        %p366 = scmp.lt.s32.totalorder %s30, 1
        %s367 = scalar_select %p366, %s30, 1
        %s368 = scalar_lea.vmem %s4, %s367
        %v370 = vld [vmem:[%s361] sm:$0xff]
        %v371 = vld [vmem:[%s365] sm:$0xff]
        %v372 = vld [vmem:[%s308] sm:$0xff]
        %v373 = vld [vmem:[%s308 + $0x8] sm:$0xf]
        %v374 = vld [vmem:[%s308 + $0xc] sm:$0xff]
        %v375 = vld [vmem:[%s308 + $0x14] sm:$0xf]
        %v376 = vld [vmem:[%s308 + $0x18] sm:$0xff]
        %v377 = vld [vmem:[%s308 + $0x20] sm:$0xf]
        %v378 = vld [vmem:[%s308 + $0x24] sm:$0xff]
        %v379 = vld [vmem:[%s308 + $0x2c] sm:$0xf]
        %v380 = vld [vmem:[%s308 + $0x30] sm:$0xff]
        %v381 = vld [vmem:[%s308 + $0x38] sm:$0xf]
        %v382 = vld [vmem:[%s308 + $0x3c] sm:$0xff]
        %v383 = vld [vmem:[%s308 + $0x44] sm:$0xf]
        %v384 = vld [vmem:[%s308 + $0x48] sm:$0xff]
        %v385 = vld [vmem:[%s308 + $0x50] sm:$0xf]
        %v386 = vld [vmem:[%s308 + $0x54] sm:$0xff]
        %v387 = vld [vmem:[%s308 + $0x5c] sm:$0xf]
        %v388 = vld [vmem:[%s308 + $0x60] sm:$0xff]
        %v389 = vld [vmem:[%s308 + $0x68] sm:$0xf]
        %v390 = vld [vmem:[%s308 + $0x6c] sm:$0xff]
        %v391 = vld [vmem:[%s308 + $0x74] sm:$0xf]
        %v392 = vld [vmem:[%s308 + $0x78] sm:$0xff]
        %v393 = vld [vmem:[%s308 + $0x80] sm:$0xf]
        %v394 = vld [vmem:[%s308 + $0x84] sm:$0xff]
        %v395 = vld [vmem:[%s308 + $0x8c] sm:$0xf]
        %v396 = vld [vmem:[%s308 + $0x90] sm:$0xff]
        %v397 = vld [vmem:[%s308 + $0x98] sm:$0xf]
        %v398 = vld [vmem:[%s308 + $0x9c] sm:$0xff]
        %v399 = vld [vmem:[%s308 + $0xa4] sm:$0xf]
        %v400 = vld [vmem:[%s308 + $0xa8] sm:$0xff]
        %v401 = vld [vmem:[%s308 + $0xb0] sm:$0xf]
        %v402 = vld [vmem:[%s308 + $0xb4] sm:$0xff]
        %v403 = vld [vmem:[%s308 + $0xbc] sm:$0xf]
        %v404 = vld [vmem:[%s368] sm:$0x1]
        %v406 = vlaneseq
        %v407 = vshrl.u32 %v406, 7
        %v408 = vsub.s32 0, %v407
        %v409 = vrot.slane %v404, %v408
        %v411 = vld [vmem:[%s299] sm:$0xff]
        %v412 = vld [vmem:[%s299 + $0x8] sm:$0xff]
        %v413 = vld [vmem:[%s299 + $0x10] sm:$0xff]
        %v446 = vunpack.c.l.b16 %v372
        %v447 = vunpack.c.h.b16 %v372
        %v448 = vunpack.c.l.b16 %v373
        %v449 = vunpack.c.l.b16 %v374
        %v450 = vunpack.c.h.b16 %v374
        %v451 = vunpack.c.l.b16 %v375
        %v452 = vunpack.c.l.b16 %v376
        %v453 = vunpack.c.h.b16 %v376
        %v454 = vunpack.c.l.b16 %v377
        %v455 = vunpack.c.l.b16 %v378
        %v456 = vunpack.c.h.b16 %v378
        %v457 = vunpack.c.l.b16 %v379
        %v458 = vunpack.c.l.b16 %v380
        %v459 = vunpack.c.h.b16 %v380
        %v460 = vunpack.c.l.b16 %v381
        %v461 = vunpack.c.l.b16 %v382
        %v462 = vunpack.c.h.b16 %v382
        %v463 = vunpack.c.l.b16 %v383
        %v464 = vunpack.c.l.b16 %v384
        %v465 = vunpack.c.h.b16 %v384
        %v466 = vunpack.c.l.b16 %v385
        %v467 = vunpack.c.l.b16 %v386
        %v468 = vunpack.c.h.b16 %v386
        %v469 = vunpack.c.l.b16 %v387
        %v470 = vunpack.c.l.b16 %v388
        %v471 = vunpack.c.h.b16 %v388
        %v472 = vunpack.c.l.b16 %v389
        %v473 = vunpack.c.l.b16 %v390
        %v474 = vunpack.c.h.b16 %v390
        %v475 = vunpack.c.l.b16 %v391
        %v476 = vunpack.c.l.b16 %v392
        %v477 = vunpack.c.h.b16 %v392
        %v478 = vunpack.c.l.b16 %v393
        %v479 = vunpack.c.l.b16 %v394
        %v480 = vunpack.c.h.b16 %v394
        %v481 = vunpack.c.l.b16 %v395
        %v482 = vunpack.c.l.b16 %v396
        %v483 = vunpack.c.h.b16 %v396
        %v484 = vunpack.c.l.b16 %v397
        %v485 = vunpack.c.l.b16 %v398
        %v486 = vunpack.c.h.b16 %v398
        %v487 = vunpack.c.l.b16 %v399
        %v488 = vunpack.c.l.b16 %v400
        %v489 = vunpack.c.h.b16 %v400
        %v490 = vunpack.c.l.b16 %v401
        %v491 = vunpack.c.l.b16 %v402
        %v492 = vunpack.c.h.b16 %v402
        %v493 = vunpack.c.l.b16 %v403
        %v494 = vpack.c.b16 %v449, %v446
        %v495 = vpack.c.b16 %v450, %v447
        %v496 = vpack.c.b16 %v451, %v448
        %v497 = vpack.c.b16 %v455, %v452
        %v498 = vpack.c.b16 %v456, %v453
        %v499 = vpack.c.b16 %v457, %v454
        %v500 = vpack.c.b16 %v461, %v458
        %v501 = vpack.c.b16 %v462, %v459
        %v502 = vpack.c.b16 %v463, %v460
        %v503 = vpack.c.b16 %v467, %v464
        %v504 = vpack.c.b16 %v468, %v465
        %v505 = vpack.c.b16 %v469, %v466
        %v506 = vpack.c.b16 %v473, %v470
        %v507 = vpack.c.b16 %v474, %v471
        %v508 = vpack.c.b16 %v475, %v472
        %v509 = vpack.c.b16 %v479, %v476
        %v510 = vpack.c.b16 %v480, %v477
        %v511 = vpack.c.b16 %v481, %v478
        %v512 = vpack.c.b16 %v485, %v482
        %v513 = vpack.c.b16 %v486, %v483
        %v514 = vpack.c.b16 %v487, %v484
        %v515 = vpack.c.b16 %v491, %v488
        %v516 = vpack.c.b16 %v492, %v489
        %v517 = vpack.c.b16 %v493, %v490
        %542 = vmatprep.subr.bf16.mxu0 %v495
        %543 = vmatpush1.bf16.msra.mxu0 %v494
        %544 = vmatprep.subr.bf16.mxu0 %v498
        %545 = vmatpush1.bf16.msra.mxu0 %v497
        %546 = vmatprep.subr.bf16.mxu0 %v501
        %547 = vmatpush1.bf16.msra.mxu0 %v500
        %548 = vmatprep.subr.bf16.mxu0 %v504
        %549 = vmatpush1.bf16.msra.mxu0 %v503
        %550 = vmatprep.subr.bf16.mxu0 %v507
        %551 = vmatpush1.bf16.msra.mxu0 %v506
        %552 = vmatprep.subr.bf16.mxu0 %v510
        %553 = vmatpush1.bf16.msra.mxu0 %v509
        %554 = vmatprep.subr.bf16.mxu0 %v513
        %555 = vmatpush1.bf16.msra.mxu0 %v512
        %556 = vmatprep.subr.bf16.mxu0 %v516
        %557 = vmatpush1.bf16.msra.mxu0 %v515
        %558 = vmatprep.subr.bf16.mxu0 0
        %559 = vmatpush1.bf16.msra.mxu0 0
        %560 = vmatprep.subr.bf16.mxu0 0
        %561 = vmatpush1.bf16.msra.mxu0 0
        %562 = vmatprep.subr.bf16.mxu0 0
        %563 = vmatpush1.bf16.msra.mxu0 0
        %564 = vmatprep.subr.bf16.mxu0 0
        %565 = vmatpush1.bf16.msra.mxu0 0
        %566 = vmatprep.subr.bf16.mxu0 0
        %567 = vmatpush1.bf16.msra.mxu0 0
        %568 = vmatprep.subr.bf16.mxu0 0
        %569 = vmatpush1.bf16.msra.mxu0 0
        %570 = vmatprep.subr.bf16.mxu0 0
        %571 = vmatpush1.bf16.msra.mxu0 0
        %572 = vmatprep.subr.bf16.mxu0 0
        %573 = vmatpush1.bf16.msra.mxu0 0
        %574 = vmatprep.mubr.bf16.mxu0 0
        %575 = vmatmul.mubr.bf16.gmra.mrb[0].mxu0 0
        %v576 = vpop.f32.mrb[0].mxu0
        %v577 = vadd.f32 0.0, %v576
        %v578 = vpop.f32.mrb[0].mxu0
        %v579 = vadd.f32 0.0, %v578
        %v580 = vpop.f32.mrb[0].mxu0
        %v581 = vpop.f32.mrb[0].mxu0
        %582 = vdwg.mxu0
        %583 = vmatprep.subr.bf16.mxu0 0
        %584 = vmatpush1.bf16.msra.mxu0 %v496
        %585 = vmatprep.subr.bf16.mxu0 0
        %586 = vmatpush1.bf16.msra.mxu0 %v499
        %587 = vmatprep.subr.bf16.mxu0 0
        %588 = vmatpush1.bf16.msra.mxu0 %v502
        %589 = vmatprep.subr.bf16.mxu0 0
        %590 = vmatpush1.bf16.msra.mxu0 %v505
        %591 = vmatprep.subr.bf16.mxu0 0
        %592 = vmatpush1.bf16.msra.mxu0 %v508
        %593 = vmatprep.subr.bf16.mxu0 0
        %594 = vmatpush1.bf16.msra.mxu0 %v511
        %595 = vmatprep.subr.bf16.mxu0 0
        %596 = vmatpush1.bf16.msra.mxu0 %v514
        %597 = vmatprep.subr.bf16.mxu0 0
        %598 = vmatpush1.bf16.msra.mxu0 %v517
        %599 = vmatprep.subr.bf16.mxu0 0
        %600 = vmatpush1.bf16.msra.mxu0 0
        %601 = vmatprep.subr.bf16.mxu0 0
        %602 = vmatpush1.bf16.msra.mxu0 0
        %603 = vmatprep.subr.bf16.mxu0 0
        %604 = vmatpush1.bf16.msra.mxu0 0
        %605 = vmatprep.subr.bf16.mxu0 0
        %606 = vmatpush1.bf16.msra.mxu0 0
        %607 = vmatprep.subr.bf16.mxu0 0
        %608 = vmatpush1.bf16.msra.mxu0 0
        %609 = vmatprep.subr.bf16.mxu0 0
        %610 = vmatpush1.bf16.msra.mxu0 0
        %611 = vmatprep.subr.bf16.mxu0 0
        %612 = vmatpush1.bf16.msra.mxu0 0
        %613 = vmatprep.subr.bf16.mxu0 0
        %614 = vmatpush1.bf16.msra.mxu0 0
        %615 = vmatprep.mubr.bf16.mxu0 0
        %616 = vmatmul.mubr.bf16.gmra.mrb[0].mxu0 0
        %v617 = vpop.f32.mrb[0].mxu0
        %v618 = vadd.f32 0.0, %v617
        %v619 = vpop.f32.mrb[0].mxu0
        %v620 = vpop.f32.mrb[0].mxu0
        %v621 = vpop.f32.mrb[0].mxu0
        %622 = vdwg.mxu0
        %v623 = vadd.f32 %v411, %v577
        %v624 = vxor.u32 %v623, 2147483648
        %v625 = vmul.f32 %v624, 1.442695
        %v626 = vpow.pop %v625
        %v627 = vadd.f32 %v626, 1.0
        %v628 = vrcp.pop %v627
        %v629 = vmul.f32 1.0, %v628
        %v630 = vadd.f32 %v412, %v579
        %v631 = vxor.u32 %v630, 2147483648
        %v632 = vmul.f32 %v631, 1.442695
        %v633 = vpow.pop %v632
        %v634 = vadd.f32 %v633, 1.0
        %v635 = vrcp.pop %v634
        %v636 = vmul.f32 1.0, %v635
        %v637 = vadd.f32 %v618, %v409
        %v638 = vmul.f32 %v629, %v637
        %v639 = vadd.f32 %v413, %v638
        %v640 = vtanh.pop %v639
        %v641 = vsub.f32 1.0, %v636
        %v642 = vmul.f32 %v641, %v640
        %v643 = vmul.f32 %v636, 0.0
        %v644 = vadd.f32 %v642, %v643
        %vm645 = vcmp.le.s32.totalorder %v370, 0
        %vm646 = vcmp.gt.s32.totalorder %v371, 0
        %vm647 = vmand %vm645, %vm646
        %v648 = vsel %vm647, 1, 0
        %649 = vset.pattern.permute.xlu0 0
        %650 = vperm.xlu0 %649, %v648
        %v651 = vpop.permute.xlu0 %650
        %vm652 = vcmp.eq.s32.totalorder %v651, 1
        %v653 = vsel %vm652, %v644, 0.0
        %654 = vst [vmem:[%s350] sm:$0xff] %v653
        %s655 = scalar_lea.vmem %s299, 24 [#allocation2]
        %v656 = vld [vmem:[%s655] sm:$0xff]
        %v657 = vld [vmem:[%s655 + $0x8] sm:$0xff]
        %v658 = vld [vmem:[%s655 + $0x10] sm:$0xff]
        %v659 = vpack.c.bf16 %v653, %v653
        %660 = vmatprep.subr.bf16.mxu0 %v495
        %661 = vmatpush1.bf16.msra.mxu0 %v494
        %662 = vmatprep.subr.bf16.mxu0 %v498
        %663 = vmatpush1.bf16.msra.mxu0 %v497
        %664 = vmatprep.subr.bf16.mxu0 %v501
        %665 = vmatpush1.bf16.msra.mxu0 %v500
        %666 = vmatprep.subr.bf16.mxu0 %v504
        %667 = vmatpush1.bf16.msra.mxu0 %v503
        %668 = vmatprep.subr.bf16.mxu0 %v507
        %669 = vmatpush1.bf16.msra.mxu0 %v506
        %670 = vmatprep.subr.bf16.mxu0 %v510
        %671 = vmatpush1.bf16.msra.mxu0 %v509
        %672 = vmatprep.subr.bf16.mxu0 %v513
        %673 = vmatpush1.bf16.msra.mxu0 %v512
        %674 = vmatprep.subr.bf16.mxu0 %v516
        %675 = vmatpush1.bf16.msra.mxu0 %v515
        %676 = vmatprep.subr.bf16.mxu0 0
        %677 = vmatpush1.bf16.msra.mxu0 0
        %678 = vmatprep.subr.bf16.mxu0 0
        %679 = vmatpush1.bf16.msra.mxu0 0
        %680 = vmatprep.subr.bf16.mxu0 0
        %681 = vmatpush1.bf16.msra.mxu0 0
        %682 = vmatprep.subr.bf16.mxu0 0
        %683 = vmatpush1.bf16.msra.mxu0 0
        %684 = vmatprep.subr.bf16.mxu0 0
        %685 = vmatpush1.bf16.msra.mxu0 0
        %686 = vmatprep.subr.bf16.mxu0 0
        %687 = vmatpush1.bf16.msra.mxu0 0
        %688 = vmatprep.subr.bf16.mxu0 0
        %689 = vmatpush1.bf16.msra.mxu0 0
        %690 = vmatprep.subr.bf16.mxu0 0
        %691 = vmatpush1.bf16.msra.mxu0 0
        %692 = vmatprep.mubr.bf16.mxu0 0
        %693 = vmatmul.mubr.bf16.gmra.mrb[0].mxu0 %v659
        %v694 = vpop.f32.mrb[0].mxu0
        %v695 = vadd.f32 0.0, %v694
        %v696 = vpop.f32.mrb[0].mxu0
        %v697 = vadd.f32 0.0, %v696
        %v698 = vpop.f32.mrb[0].mxu0
        %v699 = vpop.f32.mrb[0].mxu0
        %700 = vdwg.mxu0
        %701 = vmatprep.subr.bf16.mxu0 0
        %702 = vmatpush1.bf16.msra.mxu0 %v496
        %703 = vmatprep.subr.bf16.mxu0 0
        %704 = vmatpush1.bf16.msra.mxu0 %v499
        %705 = vmatprep.subr.bf16.mxu0 0
        %706 = vmatpush1.bf16.msra.mxu0 %v502
        %707 = vmatprep.subr.bf16.mxu0 0
        %708 = vmatpush1.bf16.msra.mxu0 %v505
        %709 = vmatprep.subr.bf16.mxu0 0
        %710 = vmatpush1.bf16.msra.mxu0 %v508
        %711 = vmatprep.subr.bf16.mxu0 0
        %712 = vmatpush1.bf16.msra.mxu0 %v511
        %713 = vmatprep.subr.bf16.mxu0 0
        %714 = vmatpush1.bf16.msra.mxu0 %v514
        %715 = vmatprep.subr.bf16.mxu0 0
        %716 = vmatpush1.bf16.msra.mxu0 %v517
        %717 = vmatprep.subr.bf16.mxu0 0
        %718 = vmatpush1.bf16.msra.mxu0 0
        %719 = vmatprep.subr.bf16.mxu0 0
        %720 = vmatpush1.bf16.msra.mxu0 0
        %721 = vmatprep.subr.bf16.mxu0 0
        %722 = vmatpush1.bf16.msra.mxu0 0
        %723 = vmatprep.subr.bf16.mxu0 0
        %724 = vmatpush1.bf16.msra.mxu0 0
        %725 = vmatprep.subr.bf16.mxu0 0
        %726 = vmatpush1.bf16.msra.mxu0 0
        %727 = vmatprep.subr.bf16.mxu0 0
        %728 = vmatpush1.bf16.msra.mxu0 0
        %729 = vmatprep.subr.bf16.mxu0 0
        %730 = vmatpush1.bf16.msra.mxu0 0
        %731 = vmatprep.subr.bf16.mxu0 0
        %732 = vmatpush1.bf16.msra.mxu0 0
        %733 = vmatprep.mubr.bf16.mxu0 0
        %734 = vmatmul.mubr.bf16.gmra.mrb[0].mxu0 %v659
        %v735 = vpop.f32.mrb[0].mxu0
        %v736 = vadd.f32 0.0, %v735
        %v737 = vpop.f32.mrb[0].mxu0
        %v738 = vpop.f32.mrb[0].mxu0
        %v739 = vpop.f32.mrb[0].mxu0
        %740 = vdwg.mxu0
        %v741 = vadd.f32 %v656, %v695
        %v742 = vxor.u32 %v741, 2147483648
        %v743 = vmul.f32 %v742, 1.442695
        %v744 = vpow.pop %v743
        %v745 = vadd.f32 %v744, 1.0
        %v746 = vrcp.pop %v745
        %v747 = vmul.f32 1.0, %v746
        %v748 = vadd.f32 %v657, %v697
        %v749 = vxor.u32 %v748, 2147483648
        %v750 = vmul.f32 %v749, 1.442695
        %v751 = vpow.pop %v750
        %v752 = vadd.f32 %v751, 1.0
        %v753 = vrcp.pop %v752
        %v754 = vmul.f32 1.0, %v753
        %v755 = vadd.f32 %v736, %v409
        %v756 = vmul.f32 %v747, %v755
        %v757 = vadd.f32 %v658, %v756
        %v758 = vtanh.pop %v757
        %v759 = vsub.f32 1.0, %v754
        %v760 = vmul.f32 %v759, %v758
        %v761 = vmul.f32 %v754, %v653
        %v762 = vadd.f32 %v760, %v761
        %vm763 = vcmp.le.s32.totalorder %v370, 1
        %vm764 = vcmp.gt.s32.totalorder %v371, 1
        %vm765 = vmand %vm763, %vm764
        %v766 = vsel %vm765, 1, 0
        %767 = vset.pattern.permute.xlu0 0
        %768 = vperm.xlu0 %767, %v766
        %v769 = vpop.permute.xlu0 %768
        %vm770 = vcmp.eq.s32.totalorder %v769, 1
        %v771 = vsel %vm770, %v762, %v653
        %v772 = vsel %vm770, %v762, 0.0
        %s773 = scalar_lea.vmem %s350, 8 [#allocation7]
        %774 = vst [vmem:[%s773] sm:$0xff] %v772
        %s775 = scalar_lea.vmem %s299, 48 [#allocation2]
        %v776 = vld [vmem:[%s775] sm:$0xff]
        %v777 = vld [vmem:[%s775 + $0x8] sm:$0xff]
        %v778 = vld [vmem:[%s775 + $0x10] sm:$0xff]
        %v779 = vpack.c.bf16 %v771, %v771
        %780 = vmatprep.subr.bf16.mxu0 %v495
        %781 = vmatpush1.bf16.msra.mxu0 %v494
        %782 = vmatprep.subr.bf16.mxu0 %v498
        %783 = vmatpush1.bf16.msra.mxu0 %v497
        %784 = vmatprep.subr.bf16.mxu0 %v501
        %785 = vmatpush1.bf16.msra.mxu0 %v500
        %786 = vmatprep.subr.bf16.mxu0 %v504
        %787 = vmatpush1.bf16.msra.mxu0 %v503
        %788 = vmatprep.subr.bf16.mxu0 %v507
        %789 = vmatpush1.bf16.msra.mxu0 %v506
        %790 = vmatprep.subr.bf16.mxu0 %v510
        %791 = vmatpush1.bf16.msra.mxu0 %v509
        %792 = vmatprep.subr.bf16.mxu0 %v513
        %793 = vmatpush1.bf16.msra.mxu0 %v512
        %794 = vmatprep.subr.bf16.mxu0 %v516
        %795 = vmatpush1.bf16.msra.mxu0 %v515
        %796 = vmatprep.subr.bf16.mxu0 0
        %797 = vmatpush1.bf16.msra.mxu0 0
        %798 = vmatprep.subr.bf16.mxu0 0
        %799 = vmatpush1.bf16.msra.mxu0 0
        %800 = vmatprep.subr.bf16.mxu0 0
        %801 = vmatpush1.bf16.msra.mxu0 0
        %802 = vmatprep.subr.bf16.mxu0 0
        %803 = vmatpush1.bf16.msra.mxu0 0
        %804 = vmatprep.subr.bf16.mxu0 0
        %805 = vmatpush1.bf16.msra.mxu0 0
        %806 = vmatprep.subr.bf16.mxu0 0
        %807 = vmatpush1.bf16.msra.mxu0 0
        %808 = vmatprep.subr.bf16.mxu0 0
        %809 = vmatpush1.bf16.msra.mxu0 0
        %810 = vmatprep.subr.bf16.mxu0 0
        %811 = vmatpush1.bf16.msra.mxu0 0
        %812 = vmatprep.mubr.bf16.mxu0 0
        %813 = vmatmul.mubr.bf16.gmra.mrb[0].mxu0 %v779
        %v814 = vpop.f32.mrb[0].mxu0
        %v815 = vadd.f32 0.0, %v814
        %v816 = vpop.f32.mrb[0].mxu0
        %v817 = vadd.f32 0.0, %v816
        %v818 = vpop.f32.mrb[0].mxu0
        %v819 = vpop.f32.mrb[0].mxu0
        %820 = vdwg.mxu0
        %821 = vmatprep.subr.bf16.mxu0 0
        %822 = vmatpush1.bf16.msra.mxu0 %v496
        %823 = vmatprep.subr.bf16.mxu0 0
        %824 = vmatpush1.bf16.msra.mxu0 %v499
        %825 = vmatprep.subr.bf16.mxu0 0
        %826 = vmatpush1.bf16.msra.mxu0 %v502
        %827 = vmatprep.subr.bf16.mxu0 0
        %828 = vmatpush1.bf16.msra.mxu0 %v505
        %829 = vmatprep.subr.bf16.mxu0 0
        %830 = vmatpush1.bf16.msra.mxu0 %v508
        %831 = vmatprep.subr.bf16.mxu0 0
        %832 = vmatpush1.bf16.msra.mxu0 %v511
        %833 = vmatprep.subr.bf16.mxu0 0
        %834 = vmatpush1.bf16.msra.mxu0 %v514
        %835 = vmatprep.subr.bf16.mxu0 0
        %836 = vmatpush1.bf16.msra.mxu0 %v517
        %837 = vmatprep.subr.bf16.mxu0 0
        %838 = vmatpush1.bf16.msra.mxu0 0
        %839 = vmatprep.subr.bf16.mxu0 0
        %840 = vmatpush1.bf16.msra.mxu0 0
        %841 = vmatprep.subr.bf16.mxu0 0
        %842 = vmatpush1.bf16.msra.mxu0 0
        %843 = vmatprep.subr.bf16.mxu0 0
        %844 = vmatpush1.bf16.msra.mxu0 0
        %845 = vmatprep.subr.bf16.mxu0 0
        %846 = vmatpush1.bf16.msra.mxu0 0
        %847 = vmatprep.subr.bf16.mxu0 0
        %848 = vmatpush1.bf16.msra.mxu0 0
        %849 = vmatprep.subr.bf16.mxu0 0
        %850 = vmatpush1.bf16.msra.mxu0 0
        %851 = vmatprep.subr.bf16.mxu0 0
        %852 = vmatpush1.bf16.msra.mxu0 0
        %853 = vmatprep.mubr.bf16.mxu0 0
        %854 = vmatmul.mubr.bf16.gmra.mrb[0].mxu0 %v779
        %v855 = vpop.f32.mrb[0].mxu0
        %v856 = vadd.f32 0.0, %v855
        %v857 = vpop.f32.mrb[0].mxu0
        %v858 = vpop.f32.mrb[0].mxu0
        %v859 = vpop.f32.mrb[0].mxu0
        %860 = vdwg.mxu0
        %v861 = vadd.f32 %v776, %v815
        %v862 = vxor.u32 %v861, 2147483648
        %v863 = vmul.f32 %v862, 1.442695
        %v864 = vpow.pop %v863
        %v865 = vadd.f32 %v864, 1.0
        %v866 = vrcp.pop %v865
        %v867 = vmul.f32 1.0, %v866
        %v868 = vadd.f32 %v777, %v817
        %v869 = vxor.u32 %v868, 2147483648
        %v870 = vmul.f32 %v869, 1.442695
        %v871 = vpow.pop %v870
        %v872 = vadd.f32 %v871, 1.0
        %v873 = vrcp.pop %v872
        %v874 = vmul.f32 1.0, %v873
        %v875 = vadd.f32 %v856, %v409
        %v876 = vmul.f32 %v867, %v875
        %v877 = vadd.f32 %v778, %v876
        %v878 = vtanh.pop %v877
        %v879 = vsub.f32 1.0, %v874
        %v880 = vmul.f32 %v879, %v878
        %v881 = vmul.f32 %v874, %v771
        %v882 = vadd.f32 %v880, %v881
        %vm883 = vcmp.le.s32.totalorder %v370, 2
        %vm884 = vcmp.gt.s32.totalorder %v371, 2
        %vm885 = vmand %vm883, %vm884
        %v886 = vsel %vm885, 1, 0
        %887 = vset.pattern.permute.xlu0 0
        %888 = vperm.xlu0 %887, %v886
        %v889 = vpop.permute.xlu0 %888
        %vm890 = vcmp.eq.s32.totalorder %v889, 1
        %v891 = vsel %vm890, %v882, %v771
        %v892 = vsel %vm890, %v882, 0.0
        %s893 = scalar_lea.vmem %s350, 16 [#allocation7]
        %894 = vst [vmem:[%s893] sm:$0xff] %v892
        %s895 = scalar_lea.vmem %s299, 72 [#allocation2]
        %v896 = vld [vmem:[%s895] sm:$0xff]
        %v897 = vld [vmem:[%s895 + $0x8] sm:$0xff]
        %v898 = vld [vmem:[%s895 + $0x10] sm:$0xff]
        %v899 = vpack.c.bf16 %v891, %v891
        %900 = vmatprep.subr.bf16.mxu0 %v495
        %901 = vmatpush1.bf16.msra.mxu0 %v494
        %902 = vmatprep.subr.bf16.mxu0 %v498
        %903 = vmatpush1.bf16.msra.mxu0 %v497
        %904 = vmatprep.subr.bf16.mxu0 %v501
        %905 = vmatpush1.bf16.msra.mxu0 %v500
        %906 = vmatprep.subr.bf16.mxu0 %v504
        %907 = vmatpush1.bf16.msra.mxu0 %v503
        %908 = vmatprep.subr.bf16.mxu0 %v507
        %909 = vmatpush1.bf16.msra.mxu0 %v506
        %910 = vmatprep.subr.bf16.mxu0 %v510
        %911 = vmatpush1.bf16.msra.mxu0 %v509
        %912 = vmatprep.subr.bf16.mxu0 %v513
        %913 = vmatpush1.bf16.msra.mxu0 %v512
        %914 = vmatprep.subr.bf16.mxu0 %v516
        %915 = vmatpush1.bf16.msra.mxu0 %v515
        %916 = vmatprep.subr.bf16.mxu0 0
        %917 = vmatpush1.bf16.msra.mxu0 0
        %918 = vmatprep.subr.bf16.mxu0 0
        %919 = vmatpush1.bf16.msra.mxu0 0
        %920 = vmatprep.subr.bf16.mxu0 0
        %921 = vmatpush1.bf16.msra.mxu0 0
        %922 = vmatprep.subr.bf16.mxu0 0
        %923 = vmatpush1.bf16.msra.mxu0 0
        %924 = vmatprep.subr.bf16.mxu0 0
        %925 = vmatpush1.bf16.msra.mxu0 0
        %926 = vmatprep.subr.bf16.mxu0 0
        %927 = vmatpush1.bf16.msra.mxu0 0
        %928 = vmatprep.subr.bf16.mxu0 0
        %929 = vmatpush1.bf16.msra.mxu0 0
        %930 = vmatprep.subr.bf16.mxu0 0
        %931 = vmatpush1.bf16.msra.mxu0 0
        %932 = vmatprep.mubr.bf16.mxu0 0
        %933 = vmatmul.mubr.bf16.gmra.mrb[0].mxu0 %v899
        %v934 = vpop.f32.mrb[0].mxu0
        %v935 = vadd.f32 0.0, %v934
        %v936 = vpop.f32.mrb[0].mxu0
        %v937 = vadd.f32 0.0, %v936
        %v938 = vpop.f32.mrb[0].mxu0
        %v939 = vpop.f32.mrb[0].mxu0
        %940 = vdwg.mxu0
        %941 = vmatprep.subr.bf16.mxu0 0
        %942 = vmatpush1.bf16.msra.mxu0 %v496
        %943 = vmatprep.subr.bf16.mxu0 0
        %944 = vmatpush1.bf16.msra.mxu0 %v499
        %945 = vmatprep.subr.bf16.mxu0 0
        %946 = vmatpush1.bf16.msra.mxu0 %v502
        %947 = vmatprep.subr.bf16.mxu0 0
        %948 = vmatpush1.bf16.msra.mxu0 %v505
        %949 = vmatprep.subr.bf16.mxu0 0
        %950 = vmatpush1.bf16.msra.mxu0 %v508
        %951 = vmatprep.subr.bf16.mxu0 0
        %952 = vmatpush1.bf16.msra.mxu0 %v511
        %953 = vmatprep.subr.bf16.mxu0 0
        %954 = vmatpush1.bf16.msra.mxu0 %v514
        %955 = vmatprep.subr.bf16.mxu0 0
        %956 = vmatpush1.bf16.msra.mxu0 %v517
        %957 = vmatprep.subr.bf16.mxu0 0
        %958 = vmatpush1.bf16.msra.mxu0 0
        %959 = vmatprep.subr.bf16.mxu0 0
        %960 = vmatpush1.bf16.msra.mxu0 0
        %961 = vmatprep.subr.bf16.mxu0 0
        %962 = vmatpush1.bf16.msra.mxu0 0
        %963 = vmatprep.subr.bf16.mxu0 0
        %964 = vmatpush1.bf16.msra.mxu0 0
        %965 = vmatprep.subr.bf16.mxu0 0
        %966 = vmatpush1.bf16.msra.mxu0 0
        %967 = vmatprep.subr.bf16.mxu0 0
        %968 = vmatpush1.bf16.msra.mxu0 0
        %969 = vmatprep.subr.bf16.mxu0 0
        %970 = vmatpush1.bf16.msra.mxu0 0
        %971 = vmatprep.subr.bf16.mxu0 0
        %972 = vmatpush1.bf16.msra.mxu0 0
        %973 = vmatprep.mubr.bf16.mxu0 0
        %974 = vmatmul.mubr.bf16.gmra.mrb[0].mxu0 %v899
        %v975 = vpop.f32.mrb[0].mxu0
        %v976 = vadd.f32 0.0, %v975
        %v977 = vpop.f32.mrb[0].mxu0
        %v978 = vpop.f32.mrb[0].mxu0
        %v979 = vpop.f32.mrb[0].mxu0
        %980 = vdwg.mxu0
        %v981 = vadd.f32 %v896, %v935
        %v982 = vxor.u32 %v981, 2147483648
        %v983 = vmul.f32 %v982, 1.442695
        %v984 = vpow.pop %v983
        %v985 = vadd.f32 %v984, 1.0
        %v986 = vrcp.pop %v985
        %v987 = vmul.f32 1.0, %v986
        %v988 = vadd.f32 %v897, %v937
        %v989 = vxor.u32 %v988, 2147483648
        %v990 = vmul.f32 %v989, 1.442695
        %v991 = vpow.pop %v990
        %v992 = vadd.f32 %v991, 1.0
        %v993 = vrcp.pop %v992
        %v994 = vmul.f32 1.0, %v993
        %v995 = vadd.f32 %v976, %v409
        %v996 = vmul.f32 %v987, %v995
        %v997 = vadd.f32 %v898, %v996
        %v998 = vtanh.pop %v997
        %v999 = vsub.f32 1.0, %v994
        %v1000 = vmul.f32 %v999, %v998
        %v1001 = vmul.f32 %v994, %v891
        %v1002 = vadd.f32 %v1000, %v1001
        %vm1003 = vcmp.le.s32.totalorder %v370, 3
        %vm1004 = vcmp.gt.s32.totalorder %v371, 3
        %vm1005 = vmand %vm1003, %vm1004
        %v1006 = vsel %vm1005, 1, 0
        %1007 = vset.pattern.permute.xlu0 0
        %1008 = vperm.xlu0 %1007, %v1006
        %v1009 = vpop.permute.xlu0 %1008
        %vm1010 = vcmp.eq.s32.totalorder %v1009, 1
        %v1011 = vsel %vm1010, %v1002, %v891
        %v1012 = vsel %vm1010, %v1002, 0.0
        %s1013 = scalar_lea.vmem %s350, 24 [#allocation7]
        %1014 = vst [vmem:[%s1013] sm:$0xff] %v1012
        %s1015 = scalar_lea.vmem %s299, 96 [#allocation2]
        %v1016 = vld [vmem:[%s1015] sm:$0xff]
        %v1017 = vld [vmem:[%s1015 + $0x8] sm:$0xff]
        %v1018 = vld [vmem:[%s1015 + $0x10] sm:$0xff]
        %v1019 = vpack.c.bf16 %v1011, %v1011
        %1020 = vmatprep.subr.bf16.mxu0 %v495
        %1021 = vmatpush1.bf16.msra.mxu0 %v494
        %1022 = vmatprep.subr.bf16.mxu0 %v498
        %1023 = vmatpush1.bf16.msra.mxu0 %v497
        %1024 = vmatprep.subr.bf16.mxu0 %v501
        %1025 = vmatpush1.bf16.msra.mxu0 %v500
        %1026 = vmatprep.subr.bf16.mxu0 %v504
        %1027 = vmatpush1.bf16.msra.mxu0 %v503
        %1028 = vmatprep.subr.bf16.mxu0 %v507
        %1029 = vmatpush1.bf16.msra.mxu0 %v506
        %1030 = vmatprep.subr.bf16.mxu0 %v510
        %1031 = vmatpush1.bf16.msra.mxu0 %v509
        %1032 = vmatprep.subr.bf16.mxu0 %v513
        %1033 = vmatpush1.bf16.msra.mxu0 %v512
        %1034 = vmatprep.subr.bf16.mxu0 %v516
        %1035 = vmatpush1.bf16.msra.mxu0 %v515
        %1036 = vmatprep.subr.bf16.mxu0 0
        %1037 = vmatpush1.bf16.msra.mxu0 0
        %1038 = vmatprep.subr.bf16.mxu0 0
        %1039 = vmatpush1.bf16.msra.mxu0 0
        %1040 = vmatprep.subr.bf16.mxu0 0
        %1041 = vmatpush1.bf16.msra.mxu0 0
        %1042 = vmatprep.subr.bf16.mxu0 0
        %1043 = vmatpush1.bf16.msra.mxu0 0
        %1044 = vmatprep.subr.bf16.mxu0 0
        %1045 = vmatpush1.bf16.msra.mxu0 0
        %1046 = vmatprep.subr.bf16.mxu0 0
        %1047 = vmatpush1.bf16.msra.mxu0 0
        %1048 = vmatprep.subr.bf16.mxu0 0
        %1049 = vmatpush1.bf16.msra.mxu0 0
        %1050 = vmatprep.subr.bf16.mxu0 0
        %1051 = vmatpush1.bf16.msra.mxu0 0
        %1052 = vmatprep.mubr.bf16.mxu0 0
        %1053 = vmatmul.mubr.bf16.gmra.mrb[0].mxu0 %v1019
        %v1054 = vpop.f32.mrb[0].mxu0
        %v1055 = vadd.f32 0.0, %v1054
        %v1056 = vpop.f32.mrb[0].mxu0
        %v1057 = vadd.f32 0.0, %v1056
        %v1058 = vpop.f32.mrb[0].mxu0
        %v1059 = vpop.f32.mrb[0].mxu0
        %1060 = vdwg.mxu0
        %1061 = vmatprep.subr.bf16.mxu0 0
        %1062 = vmatpush1.bf16.msra.mxu0 %v496
        %1063 = vmatprep.subr.bf16.mxu0 0
        %1064 = vmatpush1.bf16.msra.mxu0 %v499
        %1065 = vmatprep.subr.bf16.mxu0 0
        %1066 = vmatpush1.bf16.msra.mxu0 %v502
        %1067 = vmatprep.subr.bf16.mxu0 0
        %1068 = vmatpush1.bf16.msra.mxu0 %v505
        %1069 = vmatprep.subr.bf16.mxu0 0
        %1070 = vmatpush1.bf16.msra.mxu0 %v508
        %1071 = vmatprep.subr.bf16.mxu0 0
        %1072 = vmatpush1.bf16.msra.mxu0 %v511
        %1073 = vmatprep.subr.bf16.mxu0 0
        %1074 = vmatpush1.bf16.msra.mxu0 %v514
        %1075 = vmatprep.subr.bf16.mxu0 0
        %1076 = vmatpush1.bf16.msra.mxu0 %v517
        %1077 = vmatprep.subr.bf16.mxu0 0
        %1078 = vmatpush1.bf16.msra.mxu0 0
        %1079 = vmatprep.subr.bf16.mxu0 0
        %1080 = vmatpush1.bf16.msra.mxu0 0
        %1081 = vmatprep.subr.bf16.mxu0 0
        %1082 = vmatpush1.bf16.msra.mxu0 0
        %1083 = vmatprep.subr.bf16.mxu0 0
        %1084 = vmatpush1.bf16.msra.mxu0 0
        %1085 = vmatprep.subr.bf16.mxu0 0
        %1086 = vmatpush1.bf16.msra.mxu0 0
        %1087 = vmatprep.subr.bf16.mxu0 0
        %1088 = vmatpush1.bf16.msra.mxu0 0
        %1089 = vmatprep.subr.bf16.mxu0 0
        %1090 = vmatpush1.bf16.msra.mxu0 0
        %1091 = vmatprep.subr.bf16.mxu0 0
        %1092 = vmatpush1.bf16.msra.mxu0 0
        %1093 = vmatprep.mubr.bf16.mxu0 0
        %1094 = vmatmul.mubr.bf16.gmra.mrb[0].mxu0 %v1019
        %v1095 = vpop.f32.mrb[0].mxu0
        %v1096 = vadd.f32 0.0, %v1095
        %v1097 = vpop.f32.mrb[0].mxu0
        %v1098 = vpop.f32.mrb[0].mxu0
        %v1099 = vpop.f32.mrb[0].mxu0
        %1100 = vdwg.mxu0
        %v1101 = vadd.f32 %v1016, %v1055
        %v1102 = vxor.u32 %v1101, 2147483648
        %v1103 = vmul.f32 %v1102, 1.442695
        %v1104 = vpow.pop %v1103
        %v1105 = vadd.f32 %v1104, 1.0
        %v1106 = vrcp.pop %v1105
        %v1107 = vmul.f32 1.0, %v1106
        %v1108 = vadd.f32 %v1017, %v1057
        %v1109 = vxor.u32 %v1108, 2147483648
        %v1110 = vmul.f32 %v1109, 1.442695
        %v1111 = vpow.pop %v1110
        %v1112 = vadd.f32 %v1111, 1.0
        %v1113 = vrcp.pop %v1112
        %v1114 = vmul.f32 1.0, %v1113
        %v1115 = vadd.f32 %v1096, %v409
        %v1116 = vmul.f32 %v1107, %v1115
        %v1117 = vadd.f32 %v1018, %v1116
        %v1118 = vtanh.pop %v1117
        %v1119 = vsub.f32 1.0, %v1114
        %v1120 = vmul.f32 %v1119, %v1118
        %v1121 = vmul.f32 %v1114, %v1011
        %v1122 = vadd.f32 %v1120, %v1121
        %vm1123 = vcmp.le.s32.totalorder %v370, 4
        %vm1124 = vcmp.gt.s32.totalorder %v371, 4
        %vm1125 = vmand %vm1123, %vm1124
        %v1126 = vsel %vm1125, 1, 0
        %1127 = vset.pattern.permute.xlu0 0
        %1128 = vperm.xlu0 %1127, %v1126
        %v1129 = vpop.permute.xlu0 %1128
        %vm1130 = vcmp.eq.s32.totalorder %v1129, 1
        %v1131 = vsel %vm1130, %v1122, %v1011
        %v1132 = vsel %vm1130, %v1122, 0.0
        %s1133 = scalar_lea.vmem %s350, 32 [#allocation7]
        %1134 = vst [vmem:[%s1133] sm:$0xff] %v1132
        %s1135 = scalar_lea.vmem %s299, 120 [#allocation2]
        %v1136 = vld [vmem:[%s1135] sm:$0xff]
        %v1137 = vld [vmem:[%s1135 + $0x8] sm:$0xff]
        %v1138 = vld [vmem:[%s1135 + $0x10] sm:$0xff]
        %v1139 = vpack.c.bf16 %v1131, %v1131
        %1140 = vmatprep.subr.bf16.mxu0 %v495
        %1141 = vmatpush1.bf16.msra.mxu0 %v494
        %1142 = vmatprep.subr.bf16.mxu0 %v498
        %1143 = vmatpush1.bf16.msra.mxu0 %v497
        %1144 = vmatprep.subr.bf16.mxu0 %v501
        %1145 = vmatpush1.bf16.msra.mxu0 %v500
        %1146 = vmatprep.subr.bf16.mxu0 %v504
        %1147 = vmatpush1.bf16.msra.mxu0 %v503
        %1148 = vmatprep.subr.bf16.mxu0 %v507
        %1149 = vmatpush1.bf16.msra.mxu0 %v506
        %1150 = vmatprep.subr.bf16.mxu0 %v510
        %1151 = vmatpush1.bf16.msra.mxu0 %v509
        %1152 = vmatprep.subr.bf16.mxu0 %v513
        %1153 = vmatpush1.bf16.msra.mxu0 %v512
        %1154 = vmatprep.subr.bf16.mxu0 %v516
        %1155 = vmatpush1.bf16.msra.mxu0 %v515
        %1156 = vmatprep.subr.bf16.mxu0 0
        %1157 = vmatpush1.bf16.msra.mxu0 0
        %1158 = vmatprep.subr.bf16.mxu0 0
        %1159 = vmatpush1.bf16.msra.mxu0 0
        %1160 = vmatprep.subr.bf16.mxu0 0
        %1161 = vmatpush1.bf16.msra.mxu0 0
        %1162 = vmatprep.subr.bf16.mxu0 0
        %1163 = vmatpush1.bf16.msra.mxu0 0
        %1164 = vmatprep.subr.bf16.mxu0 0
        %1165 = vmatpush1.bf16.msra.mxu0 0
        %1166 = vmatprep.subr.bf16.mxu0 0
        %1167 = vmatpush1.bf16.msra.mxu0 0
        %1168 = vmatprep.subr.bf16.mxu0 0
        %1169 = vmatpush1.bf16.msra.mxu0 0
        %1170 = vmatprep.subr.bf16.mxu0 0
        %1171 = vmatpush1.bf16.msra.mxu0 0
        %1172 = vmatprep.mubr.bf16.mxu0 0
        %1173 = vmatmul.mubr.bf16.gmra.mrb[0].mxu0 %v1139
        %v1174 = vpop.f32.mrb[0].mxu0
        %v1175 = vadd.f32 0.0, %v1174
        %v1176 = vpop.f32.mrb[0].mxu0
        %v1177 = vadd.f32 0.0, %v1176
        %v1178 = vpop.f32.mrb[0].mxu0
        %v1179 = vpop.f32.mrb[0].mxu0
        %1180 = vdwg.mxu0
        %1181 = vmatprep.subr.bf16.mxu0 0
        %1182 = vmatpush1.bf16.msra.mxu0 %v496
        %1183 = vmatprep.subr.bf16.mxu0 0
        %1184 = vmatpush1.bf16.msra.mxu0 %v499
        %1185 = vmatprep.subr.bf16.mxu0 0
        %1186 = vmatpush1.bf16.msra.mxu0 %v502
        %1187 = vmatprep.subr.bf16.mxu0 0
        %1188 = vmatpush1.bf16.msra.mxu0 %v505
        %1189 = vmatprep.subr.bf16.mxu0 0
        %1190 = vmatpush1.bf16.msra.mxu0 %v508
        %1191 = vmatprep.subr.bf16.mxu0 0
        %1192 = vmatpush1.bf16.msra.mxu0 %v511
        %1193 = vmatprep.subr.bf16.mxu0 0
        %1194 = vmatpush1.bf16.msra.mxu0 %v514
        %1195 = vmatprep.subr.bf16.mxu0 0
        %1196 = vmatpush1.bf16.msra.mxu0 %v517
        %1197 = vmatprep.subr.bf16.mxu0 0
        %1198 = vmatpush1.bf16.msra.mxu0 0
        %1199 = vmatprep.subr.bf16.mxu0 0
        %1200 = vmatpush1.bf16.msra.mxu0 0
        %1201 = vmatprep.subr.bf16.mxu0 0
        %1202 = vmatpush1.bf16.msra.mxu0 0
        %1203 = vmatprep.subr.bf16.mxu0 0
        %1204 = vmatpush1.bf16.msra.mxu0 0
        %1205 = vmatprep.subr.bf16.mxu0 0
        %1206 = vmatpush1.bf16.msra.mxu0 0
        %1207 = vmatprep.subr.bf16.mxu0 0
        %1208 = vmatpush1.bf16.msra.mxu0 0
        %1209 = vmatprep.subr.bf16.mxu0 0
        %1210 = vmatpush1.bf16.msra.mxu0 0
        %1211 = vmatprep.subr.bf16.mxu0 0
        %1212 = vmatpush1.bf16.msra.mxu0 0
        %1213 = vmatprep.mubr.bf16.mxu0 0
        %1214 = vmatmul.mubr.bf16.gmra.mrb[0].mxu0 %v1139
        %v1215 = vpop.f32.mrb[0].mxu0
        %v1216 = vadd.f32 0.0, %v1215
        %v1217 = vpop.f32.mrb[0].mxu0
        %v1218 = vpop.f32.mrb[0].mxu0
        %v1219 = vpop.f32.mrb[0].mxu0
        %1220 = vdwg.mxu0
        %v1221 = vadd.f32 %v1136, %v1175
        %v1222 = vxor.u32 %v1221, 2147483648
        %v1223 = vmul.f32 %v1222, 1.442695
        %v1224 = vpow.pop %v1223
        %v1225 = vadd.f32 %v1224, 1.0
        %v1226 = vrcp.pop %v1225
        %v1227 = vmul.f32 1.0, %v1226
        %v1228 = vadd.f32 %v1137, %v1177
        %v1229 = vxor.u32 %v1228, 2147483648
        %v1230 = vmul.f32 %v1229, 1.442695
        %v1231 = vpow.pop %v1230
        %v1232 = vadd.f32 %v1231, 1.0
        %v1233 = vrcp.pop %v1232
        %v1234 = vmul.f32 1.0, %v1233
        %v1235 = vadd.f32 %v1216, %v409
        %v1236 = vmul.f32 %v1227, %v1235
        %v1237 = vadd.f32 %v1138, %v1236
        %v1238 = vtanh.pop %v1237
        %v1239 = vsub.f32 1.0, %v1234
        %v1240 = vmul.f32 %v1239, %v1238
        %v1241 = vmul.f32 %v1234, %v1131
        %v1242 = vadd.f32 %v1240, %v1241
        %vm1243 = vcmp.le.s32.totalorder %v370, 5
        %vm1244 = vcmp.gt.s32.totalorder %v371, 5
        %vm1245 = vmand %vm1243, %vm1244
        %v1246 = vsel %vm1245, 1, 0
        %1247 = vset.pattern.permute.xlu0 0
        %1248 = vperm.xlu0 %1247, %v1246
        %v1249 = vpop.permute.xlu0 %1248
        %vm1250 = vcmp.eq.s32.totalorder %v1249, 1
        %v1251 = vsel %vm1250, %v1242, %v1131
        %v1252 = vsel %vm1250, %v1242, 0.0
        %s1253 = scalar_lea.vmem %s350, 40 [#allocation7]
        %1254 = vst [vmem:[%s1253] sm:$0xff] %v1252
        %s1255 = scalar_lea.vmem %s299, 144 [#allocation2]
        %v1256 = vld [vmem:[%s1255] sm:$0xff]
        %v1257 = vld [vmem:[%s1255 + $0x8] sm:$0xff]
        %v1258 = vld [vmem:[%s1255 + $0x10] sm:$0xff]
        %v1259 = vpack.c.bf16 %v1251, %v1251
        %1260 = vmatprep.subr.bf16.mxu0 %v495
        %1261 = vmatpush1.bf16.msra.mxu0 %v494
        %1262 = vmatprep.subr.bf16.mxu0 %v498
        %1263 = vmatpush1.bf16.msra.mxu0 %v497
        %1264 = vmatprep.subr.bf16.mxu0 %v501
        %1265 = vmatpush1.bf16.msra.mxu0 %v500
        %1266 = vmatprep.subr.bf16.mxu0 %v504
        %1267 = vmatpush1.bf16.msra.mxu0 %v503
        %1268 = vmatprep.subr.bf16.mxu0 %v507
        %1269 = vmatpush1.bf16.msra.mxu0 %v506
        %1270 = vmatprep.subr.bf16.mxu0 %v510
        %1271 = vmatpush1.bf16.msra.mxu0 %v509
        %1272 = vmatprep.subr.bf16.mxu0 %v513
        %1273 = vmatpush1.bf16.msra.mxu0 %v512
        %1274 = vmatprep.subr.bf16.mxu0 %v516
        %1275 = vmatpush1.bf16.msra.mxu0 %v515
        %1276 = vmatprep.subr.bf16.mxu0 0
        %1277 = vmatpush1.bf16.msra.mxu0 0
        %1278 = vmatprep.subr.bf16.mxu0 0
        %1279 = vmatpush1.bf16.msra.mxu0 0
        %1280 = vmatprep.subr.bf16.mxu0 0
        %1281 = vmatpush1.bf16.msra.mxu0 0
        %1282 = vmatprep.subr.bf16.mxu0 0
        %1283 = vmatpush1.bf16.msra.mxu0 0
        %1284 = vmatprep.subr.bf16.mxu0 0
        %1285 = vmatpush1.bf16.msra.mxu0 0
        %1286 = vmatprep.subr.bf16.mxu0 0
        %1287 = vmatpush1.bf16.msra.mxu0 0
        %1288 = vmatprep.subr.bf16.mxu0 0
        %1289 = vmatpush1.bf16.msra.mxu0 0
        %1290 = vmatprep.subr.bf16.mxu0 0
        %1291 = vmatpush1.bf16.msra.mxu0 0
        %1292 = vmatprep.mubr.bf16.mxu0 0
        %1293 = vmatmul.mubr.bf16.gmra.mrb[0].mxu0 %v1259
        %v1294 = vpop.f32.mrb[0].mxu0
        %v1295 = vadd.f32 0.0, %v1294
        %v1296 = vpop.f32.mrb[0].mxu0
        %v1297 = vadd.f32 0.0, %v1296
        %v1298 = vpop.f32.mrb[0].mxu0
        %v1299 = vpop.f32.mrb[0].mxu0
        %1300 = vdwg.mxu0
        %1301 = vmatprep.subr.bf16.mxu0 0
        %1302 = vmatpush1.bf16.msra.mxu0 %v496
        %1303 = vmatprep.subr.bf16.mxu0 0
        %1304 = vmatpush1.bf16.msra.mxu0 %v499
        %1305 = vmatprep.subr.bf16.mxu0 0
        %1306 = vmatpush1.bf16.msra.mxu0 %v502
        %1307 = vmatprep.subr.bf16.mxu0 0
        %1308 = vmatpush1.bf16.msra.mxu0 %v505
        %1309 = vmatprep.subr.bf16.mxu0 0
        %1310 = vmatpush1.bf16.msra.mxu0 %v508
        %1311 = vmatprep.subr.bf16.mxu0 0
        %1312 = vmatpush1.bf16.msra.mxu0 %v511
        %1313 = vmatprep.subr.bf16.mxu0 0
        %1314 = vmatpush1.bf16.msra.mxu0 %v514
        %1315 = vmatprep.subr.bf16.mxu0 0
        %1316 = vmatpush1.bf16.msra.mxu0 %v517
        %1317 = vmatprep.subr.bf16.mxu0 0
        %1318 = vmatpush1.bf16.msra.mxu0 0
        %1319 = vmatprep.subr.bf16.mxu0 0
        %1320 = vmatpush1.bf16.msra.mxu0 0
        %1321 = vmatprep.subr.bf16.mxu0 0
        %1322 = vmatpush1.bf16.msra.mxu0 0
        %1323 = vmatprep.subr.bf16.mxu0 0
        %1324 = vmatpush1.bf16.msra.mxu0 0
        %1325 = vmatprep.subr.bf16.mxu0 0
        %1326 = vmatpush1.bf16.msra.mxu0 0
        %1327 = vmatprep.subr.bf16.mxu0 0
        %1328 = vmatpush1.bf16.msra.mxu0 0
        %1329 = vmatprep.subr.bf16.mxu0 0
        %1330 = vmatpush1.bf16.msra.mxu0 0
        %1331 = vmatprep.subr.bf16.mxu0 0
        %1332 = vmatpush1.bf16.msra.mxu0 0
        %1333 = vmatprep.mubr.bf16.mxu0 0
        %1334 = vmatmul.mubr.bf16.gmra.mrb[0].mxu0 %v1259
        %v1335 = vpop.f32.mrb[0].mxu0
        %v1336 = vadd.f32 0.0, %v1335
        %v1337 = vpop.f32.mrb[0].mxu0
        %v1338 = vpop.f32.mrb[0].mxu0
        %v1339 = vpop.f32.mrb[0].mxu0
        %1340 = vdwg.mxu0
        %v1341 = vadd.f32 %v1256, %v1295
        %v1342 = vxor.u32 %v1341, 2147483648
        %v1343 = vmul.f32 %v1342, 1.442695
        %v1344 = vpow.pop %v1343
        %v1345 = vadd.f32 %v1344, 1.0
        %v1346 = vrcp.pop %v1345
        %v1347 = vmul.f32 1.0, %v1346
        %v1348 = vadd.f32 %v1257, %v1297
        %v1349 = vxor.u32 %v1348, 2147483648
        %v1350 = vmul.f32 %v1349, 1.442695
        %v1351 = vpow.pop %v1350
        %v1352 = vadd.f32 %v1351, 1.0
        %v1353 = vrcp.pop %v1352
        %v1354 = vmul.f32 1.0, %v1353
        %v1355 = vadd.f32 %v1336, %v409
        %v1356 = vmul.f32 %v1347, %v1355
        %v1357 = vadd.f32 %v1258, %v1356
        %v1358 = vtanh.pop %v1357
        %v1359 = vsub.f32 1.0, %v1354
        %v1360 = vmul.f32 %v1359, %v1358
        %v1361 = vmul.f32 %v1354, %v1251
        %v1362 = vadd.f32 %v1360, %v1361
        %vm1363 = vcmp.le.s32.totalorder %v370, 6
        %vm1364 = vcmp.gt.s32.totalorder %v371, 6
        %vm1365 = vmand %vm1363, %vm1364
        %v1366 = vsel %vm1365, 1, 0
        %1367 = vset.pattern.permute.xlu0 0
        %1368 = vperm.xlu0 %1367, %v1366
        %v1369 = vpop.permute.xlu0 %1368
        %vm1370 = vcmp.eq.s32.totalorder %v1369, 1
        %v1371 = vsel %vm1370, %v1362, %v1251
        %v1372 = vsel %vm1370, %v1362, 0.0
        %s1373 = scalar_lea.vmem %s350, 48 [#allocation7]
        %1374 = vst [vmem:[%s1373] sm:$0xff] %v1372
        %s1375 = scalar_lea.vmem %s299, 168 [#allocation2]
        %v1376 = vld [vmem:[%s1375] sm:$0xff]
        %v1377 = vld [vmem:[%s1375 + $0x8] sm:$0xff]
        %v1378 = vld [vmem:[%s1375 + $0x10] sm:$0xff]
        %v1379 = vpack.c.bf16 %v1371, %v1371
        %1380 = vmatprep.subr.bf16.mxu0 %v495
        %1381 = vmatpush1.bf16.msra.mxu0 %v494
        %1382 = vmatprep.subr.bf16.mxu0 %v498
        %1383 = vmatpush1.bf16.msra.mxu0 %v497
        %1384 = vmatprep.subr.bf16.mxu0 %v501
        %1385 = vmatpush1.bf16.msra.mxu0 %v500
        %1386 = vmatprep.subr.bf16.mxu0 %v504
        %1387 = vmatpush1.bf16.msra.mxu0 %v503
        %1388 = vmatprep.subr.bf16.mxu0 %v507
        %1389 = vmatpush1.bf16.msra.mxu0 %v506
        %1390 = vmatprep.subr.bf16.mxu0 %v510
        %1391 = vmatpush1.bf16.msra.mxu0 %v509
        %1392 = vmatprep.subr.bf16.mxu0 %v513
        %1393 = vmatpush1.bf16.msra.mxu0 %v512
        %1394 = vmatprep.subr.bf16.mxu0 %v516
        %1395 = vmatpush1.bf16.msra.mxu0 %v515
        %1396 = vmatprep.subr.bf16.mxu0 0
        %1397 = vmatpush1.bf16.msra.mxu0 0
        %1398 = vmatprep.subr.bf16.mxu0 0
        %1399 = vmatpush1.bf16.msra.mxu0 0
        %1400 = vmatprep.subr.bf16.mxu0 0
        %1401 = vmatpush1.bf16.msra.mxu0 0
        %1402 = vmatprep.subr.bf16.mxu0 0
        %1403 = vmatpush1.bf16.msra.mxu0 0
        %1404 = vmatprep.subr.bf16.mxu0 0
        %1405 = vmatpush1.bf16.msra.mxu0 0
        %1406 = vmatprep.subr.bf16.mxu0 0
        %1407 = vmatpush1.bf16.msra.mxu0 0
        %1408 = vmatprep.subr.bf16.mxu0 0
        %1409 = vmatpush1.bf16.msra.mxu0 0
        %1410 = vmatprep.subr.bf16.mxu0 0
        %1411 = vmatpush1.bf16.msra.mxu0 0
        %1412 = vmatprep.mubr.bf16.mxu0 0
        %1413 = vmatmul.mubr.bf16.gmra.mrb[0].mxu0 %v1379
        %v1414 = vpop.f32.mrb[0].mxu0
        %v1415 = vadd.f32 0.0, %v1414
        %v1416 = vpop.f32.mrb[0].mxu0
        %v1417 = vadd.f32 0.0, %v1416
        %v1418 = vpop.f32.mrb[0].mxu0
        %v1419 = vpop.f32.mrb[0].mxu0
        %1420 = vdwg.mxu0
        %1421 = vmatprep.subr.bf16.mxu0 0
        %1422 = vmatpush1.bf16.msra.mxu0 %v496
        %1423 = vmatprep.subr.bf16.mxu0 0
        %1424 = vmatpush1.bf16.msra.mxu0 %v499
        %1425 = vmatprep.subr.bf16.mxu0 0
        %1426 = vmatpush1.bf16.msra.mxu0 %v502
        %1427 = vmatprep.subr.bf16.mxu0 0
        %1428 = vmatpush1.bf16.msra.mxu0 %v505
        %1429 = vmatprep.subr.bf16.mxu0 0
        %1430 = vmatpush1.bf16.msra.mxu0 %v508
        %1431 = vmatprep.subr.bf16.mxu0 0
        %1432 = vmatpush1.bf16.msra.mxu0 %v511
        %1433 = vmatprep.subr.bf16.mxu0 0
        %1434 = vmatpush1.bf16.msra.mxu0 %v514
        %1435 = vmatprep.subr.bf16.mxu0 0
        %1436 = vmatpush1.bf16.msra.mxu0 %v517
        %1437 = vmatprep.subr.bf16.mxu0 0
        %1438 = vmatpush1.bf16.msra.mxu0 0
        %1439 = vmatprep.subr.bf16.mxu0 0
        %1440 = vmatpush1.bf16.msra.mxu0 0
        %1441 = vmatprep.subr.bf16.mxu0 0
        %1442 = vmatpush1.bf16.msra.mxu0 0
        %1443 = vmatprep.subr.bf16.mxu0 0
        %1444 = vmatpush1.bf16.msra.mxu0 0
        %1445 = vmatprep.subr.bf16.mxu0 0
        %1446 = vmatpush1.bf16.msra.mxu0 0
        %1447 = vmatprep.subr.bf16.mxu0 0
        %1448 = vmatpush1.bf16.msra.mxu0 0
        %1449 = vmatprep.subr.bf16.mxu0 0
        %1450 = vmatpush1.bf16.msra.mxu0 0
        %1451 = vmatprep.subr.bf16.mxu0 0
        %1452 = vmatpush1.bf16.msra.mxu0 0
        %1453 = vmatprep.mubr.bf16.mxu0 0
        %1454 = vmatmul.mubr.bf16.gmra.mrb[0].mxu0 %v1379
        %v1455 = vpop.f32.mrb[0].mxu0
        %v1456 = vadd.f32 0.0, %v1455
        %v1457 = vpop.f32.mrb[0].mxu0
        %v1458 = vpop.f32.mrb[0].mxu0
        %v1459 = vpop.f32.mrb[0].mxu0
        %1460 = vdwg.mxu0
        %v1461 = vadd.f32 %v1376, %v1415
        %v1462 = vxor.u32 %v1461, 2147483648
        %v1463 = vmul.f32 %v1462, 1.442695
        %v1464 = vpow.pop %v1463
        %v1465 = vadd.f32 %v1464, 1.0
        %v1466 = vrcp.pop %v1465
        %v1467 = vmul.f32 1.0, %v1466
        %v1468 = vadd.f32 %v1377, %v1417
        %v1469 = vxor.u32 %v1468, 2147483648
        %v1470 = vmul.f32 %v1469, 1.442695
        %v1471 = vpow.pop %v1470
        %v1472 = vadd.f32 %v1471, 1.0
        %v1473 = vrcp.pop %v1472
        %v1474 = vmul.f32 1.0, %v1473
        %v1475 = vadd.f32 %v1456, %v409
        %v1476 = vmul.f32 %v1467, %v1475
        %v1477 = vadd.f32 %v1378, %v1476
        %v1478 = vtanh.pop %v1477
        %v1479 = vsub.f32 1.0, %v1474
        %v1480 = vmul.f32 %v1479, %v1478
        %v1481 = vmul.f32 %v1474, %v1371
        %v1482 = vadd.f32 %v1480, %v1481
        %vm1483 = vcmp.le.s32.totalorder %v370, 7
        %vm1484 = vcmp.gt.s32.totalorder %v371, 7
        %vm1485 = vmand %vm1483, %vm1484
        %v1486 = vsel %vm1485, 1, 0
        %1487 = vset.pattern.permute.xlu0 0
        %1488 = vperm.xlu0 %1487, %v1486
        %v1489 = vpop.permute.xlu0 %1488
        %vm1490 = vcmp.eq.s32.totalorder %v1489, 1
        %v1491 = vsel %vm1490, %v1482, %v1371
        %v1492 = vsel %vm1490, %v1482, 0.0
        %s1493 = scalar_lea.vmem %s350, 56 [#allocation7]
        %1494 = vst [vmem:[%s1493] sm:$0xff] %v1492
        %1495 = vst [vmem:[%s357] sm:$0xff] %v1491
        %s1496 = sand.u32 %s168, 1
        %s1497 = scalar_lea.sflag [#allocation4], %s1496
        %s1498 = sand.u32 %s168, 1
        %s1499 = smul.addr %s1498, 64
        %s1500 = scalar_lea.vmem [#allocation7], %s1499
        %s1501 = sand.u32 %s194, 1
        %s1502 = scalar_lea.sflag [#allocation9], %s1501
        %s1503 = sand.u32 %s194, 1
        %s1504 = smul.addr %s1503, 8
        %s1505 = scalar_lea.vmem [#allocation8], %s1504
        // Predicated region
        $region49: #{tpu_custom_call.1} parent=39 // pred_check
          %p1506 = pneg %p178
        $region50: #{tpu_custom_call.1} parent=39 // pred_check_branch
          %1508 = sbr.rel (%p1506) target = $region52
        $region51: #{tpu_custom_call.1} parent=39 // pred_region
          %s1510 = ssub.s32 1024, 1024
          %1511 = vsyncadd %s1497, %s1510
          %s1512 = smul.addr %s30, 8
          %s1513 = smul.addr %s1512, 128
          %s1514 = scalar_lea.hbm %s5, %s1513
          %s1515 = sshll.u32 %s1500, 4
          %s1516 = int_to_ptr.vmem [resolvable:$true] %s1515
          %1521 = dma.vmem_to_hbm [thread:$0]  %s1516, 1024, %s1514, %s1497, 128, 128, 8
        $region52: #{tpu_custom_call.1} parent=39 // pred_fallthru
          _
        // Predicated region
        $region53: #{tpu_custom_call.1} parent=39 // pred_check
          %p1522 = pneg %p204
        $region54: #{tpu_custom_call.1} parent=39 // pred_check_branch
          %1524 = sbr.rel (%p1522) target = $region56
        $region55: #{tpu_custom_call.1} parent=39 // pred_region
          %s1526 = ssub.s32 128, 128
          %1527 = vsyncadd %s1502, %s1526
          %s1528 = smul.addr %s30, 128
          %s1529 = scalar_lea.hbm %s6, %s1528
          %s1531 = sshll.u32 %s1505, 4
          %s1532 = int_to_ptr.vmem [resolvable:$true] %s1531
          %1534 = dma.vmem_to_hbm [thread:$0]  %s1532, 128, %s1529, %s1502
        $region56: #{tpu_custom_call.1} parent=39 // pred_fallthru
          _
      $region40: #{tpu_custom_call.1} parent=5 // pred_fallthru
        _
      %p1535 = scmp.le.s32.totalorder 2, %s25
      // Predicated region
      $region57: #{tpu_custom_call.1} parent=5 // pred_check
        %p1536 = pneg %p1535
      $region58: #{tpu_custom_call.1} parent=5 // pred_check_branch
        %1538 = sbr.rel (%p1536) target = $region60
      $region59: #{tpu_custom_call.1} parent=5 // pred_region
        %s1539 = ssub.s32 %s25, 2
        // Predicated region
        $region61: #{tpu_custom_call.1} parent=59 // pred_check
          %p1540 = pneg %p184
        $region62: #{tpu_custom_call.1} parent=59 // pred_check_branch
          %1542 = sbr.rel (%p1540) target = $region64
        $region63: #{tpu_custom_call.1} parent=59 // pred_region
          %s1543 = sand.u32 %s169, 1
          %s1544 = scalar_lea.sflag [#allocation4], %s1543
          %s1545 = sand.u32 %s169, 1
          %s1546 = smul.addr %s1545, 64
          %s1547 = scalar_lea.vmem [#allocation7], %s1546
          %1548 = dma.done %s1544, 1024
        $region64: #{tpu_custom_call.1} parent=59 // pred_fallthru
          _
        // Predicated region
        $region65: #{tpu_custom_call.1} parent=59 // pred_check
          %p1549 = pneg %p210
        $region66: #{tpu_custom_call.1} parent=59 // pred_check_branch
          %1551 = sbr.rel (%p1549) target = $region68
        $region67: #{tpu_custom_call.1} parent=59 // pred_region
          %s1552 = sand.u32 %s195, 1
          %s1553 = scalar_lea.sflag [#allocation9], %s1552
          %s1554 = sand.u32 %s195, 1
          %s1555 = smul.addr %s1554, 8
          %s1556 = scalar_lea.vmem [#allocation8], %s1555
          %1557 = dma.done %s1553, 128
        $region68: #{tpu_custom_call.1} parent=59 // pred_fallthru
          _
      $region60: #{tpu_custom_call.1} parent=5 // pred_fallthru
        _
    $region6: #{tpu_custom_call.1} parent=1 // loop_footer
      %s29 = sadd.s32 1, %s25
    $region7: #{tpu_custom_call.1} parent=1 // loop_footer_branch
      %24 = sbr.rel target = $region3
    $region8: #{tpu_custom_call.1} parent=1 // loop_exit
      _
    %1558 = vsyncpa [#allocation3], 1
    %s1559 = scalar_lea.sflag [#allocation3], 1
    %1560 = vsyncpa %s1559, 1
    %1561 = vsyncpa [#allocation6], 1
    %s1562 = scalar_lea.sflag [#allocation6], 1
    %1563 = vsyncpa %s1562, 1
    %1564 = vsyncpa [#allocation4], 1
    %s1565 = scalar_lea.sflag [#allocation4], 1
    %1566 = vsyncpa %s1565, 1
    %1567 = vsyncpa [#allocation9], 1
    %s1568 = scalar_lea.sflag [#allocation9], 1
    %1569 = vsyncpa %s1568, 1

</llo_original>
